<compile_context>
chip_gen: v6e
topology: v6e:2x2x1
jax: 0.10.0
libtpu: 0.0.40
codegen_flags: <defaults>
</compile_context>

<pallas_src>
import functools

import jax
import jax.numpy as jnp
from jax import lax
from jax.experimental import pallas as pl
from jax.experimental.pallas import tpu as pltpu


# ----------------------------- shared helpers --------------------------------

def _layer_norm(x, gamma, beta, eps=1e-5):
    mean = jnp.mean(x, axis=-1, keepdims=True)
    var = jnp.mean((x - mean) ** 2, axis=-1, keepdims=True)
    return (x - mean) * jax.lax.rsqrt(var + eps) * gamma + beta


# ----------------------------- Pallas kernel ---------------------------------

def encoder_layer_kernel(x_ref, npm_ref, km_ref,
                         wqkv_ref, bqkv_ref, fcw_ref,
                         w1_ref, b1_ref, w2_ref, misc_ref,
                         out_ref, attn_ref,
                         *, n_head, d_k, d_v):
    # One grid step == one batch element (grid=(B,), "parallel").
    L = x_ref.shape[1]
    HK = n_head * d_k

    x = x_ref[0]                                   # (L, D) f32 residual path
    xb = x.astype(jnp.bfloat16)                    # matmul input
    npm = npm_ref[0]                               # (L, 1) non-pad mask
    km = km_ref[0]                                 # (1, L) key-pad mask (1 = masked)

    fcb = misc_ref[0]                              # (1, D)
    ln1g, ln1b = misc_ref[1], misc_ref[2]
    b2 = misc_ref[3]
    ln2g, ln2b = misc_ref[4], misc_ref[5]

    scale = 1.0 / (float(d_k) ** 0.5)

    # ---- Fused QKV projection: single wide matmul, bias add hoisted once -------------
    qkv = jnp.dot(xb, wqkv_ref[...], preferred_element_type=jnp.float32) + bqkv_ref[...]
    q2 = (qkv[:, :HK] * scale).astype(jnp.bfloat16)        # scale folded into Q once
    k2 = qkv[:, HK:2 * HK].astype(jnp.bfloat16)            # K bias already dropped (wrapper)
    v2 = qkv[:, 2 * HK:].astype(jnp.bfloat16)

    # ---- Per-head attention core (score / softmax / PV are inherently per-head) ------
    o_parts = []
    for h in range(n_head):                        # static; H is small — see TODO for real L
        qh = q2[:, h * d_k:(h + 1) * d_k]          # (L, d_k) static lane slice (no matmul)
        kh = k2[:, h * d_k:(h + 1) * d_k]
        vh = v2[:, h * d_v:(h + 1) * d_v]

        # Contract d_k directly — no kh.T, so no XLU transpose of the K tile.
        s = lax.dot_general(qh, kh, (((1,), (1,)), ((), ())),
                            preferred_element_type=jnp.float32)          # (L, L)
        s = jnp.where(km > 0, -jnp.inf, s)         # key-pad mask, broadcast over queries
        p = jnp.exp(s - jnp.max(s, axis=-1, keepdims=True))
        p = p * pl.reciprocal(jnp.sum(p, axis=-1, keepdims=True), approx=True)   # EUP vrcp

        attn_ref[h, 0] = p.astype(attn_ref.dtype)
        o_parts.append(jnp.dot(p.astype(jnp.bfloat16), vh,
                               preferred_element_type=jnp.float32))       # (L, d_v)

    # ---- Output projection: lane-pack heads -> ONE matmul with K = H*d_v --------------
    o_packed = jnp.concatenate(o_parts, axis=-1).astype(jnp.bfloat16)     # (L, H*d_v)
    proj = jnp.dot(o_packed, fcw_ref[...], preferred_element_type=jnp.float32)   # (L, D)

    # LayerNorm + residual; *non_pad_mask fused into the epilogue expressions.
    attn_out = _layer_norm(proj + fcb + x, ln1g, ln1b) * npm

    # ---- Position-wise FFN (Conv1d k=1 == per-position dense matmul) ------------------
    hid = jnp.dot(attn_out.astype(jnp.bfloat16), w1_ref[...],
                  preferred_element_type=jnp.float32) + b1_ref[...]
    hid = jnp.maximum(hid, 0.0)
    ffn = jnp.dot(hid.astype(jnp.bfloat16), w2_ref[...],
                  preferred_element_type=jnp.float32) + b2
    out_ref[0] = (_layer_norm(ffn + attn_out, ln2g, ln2b) * npm).astype(out_ref.dtype)


# ----------------------------- Wrapper ----------------------------------------

def encoder_layer(enc_input, non_pad_mask, slf_attn_mask, params,
                  *, n_head, d_k, d_v, attn_dtype=jnp.float32):
    B, L, D = enc_input.shape
    HK, HV = n_head * d_k, n_head * d_v
    d_inner = params["w1"].shape[1]

    # ---- pack weights for the fused matmuls -------------------------------------------
    # Columns ordered [Q | K | V], each section head-major (h, d) — matches PyTorch layout.
    wqkv = jnp.concatenate([params["wq"], params["wk"], params["wv"]], axis=1
                           ).astype(jnp.bfloat16)                        # (D, 2*HK+HV)
    # K-projection bias cancels exactly in softmax (constant along the key axis) -> zeroed.
    bqkv = jnp.concatenate([params["bq"], jnp.zeros_like(params["bk"]), params["bv"]],
                           axis=1).astype(jnp.float32)                   # (1, 2*HK+HV)
    fcw = params["fcw"].astype(jnp.bfloat16)                             # (HV, D) head-major rows
    w1 = params["w1"].astype(jnp.bfloat16)                               # (D, d_inner)
    b1 = params["b1"].astype(jnp.float32)                                # (1, d_inner)
    w2 = params["w2"].astype(jnp.bfloat16)                               # (d_inner, D)
    misc = jnp.stack([params["fcb"], params["ln1g"], params["ln1b"],
                      params["b2"], params["ln2g"], params["ln2b"]]).astype(jnp.float32)  # (6,1,D)

    # Key-pad mask is constant over the query axis -> ship only (B, 1, L), not (B, L, L).
    km = slf_attn_mask[:, :1, :].astype(jnp.float32)

    # enc_input kept f32: it is the residual / LayerNorm input (bf16 casts for the matmuls
    # happen inside the kernel).  On bandwidth-bound v5e it could be shipped bf16 instead.
    x = enc_input.astype(jnp.float32)
    npm = non_pad_mask.astype(jnp.float32)

    kernel = functools.partial(encoder_layer_kernel, n_head=n_head, d_k=d_k, d_v=d_v)

    in_specs = [
        pl.BlockSpec((1, L, D), lambda b: (b, 0, 0)),          # x
        pl.BlockSpec((1, L, 1), lambda b: (b, 0, 0)),          # non_pad_mask
        pl.BlockSpec((1, 1, L), lambda b: (b, 0, 0)),          # key-pad mask
        pl.BlockSpec((D, 2 * HK + HV), lambda b: (0, 0)),      # wqkv (resident)
        pl.BlockSpec((1, 2 * HK + HV), lambda b: (0, 0)),      # bqkv
        pl.BlockSpec((HV, D), lambda b: (0, 0)),               # fcw
        pl.BlockSpec((D, d_inner), lambda b: (0, 0)),          # w1
        pl.BlockSpec((1, d_inner), lambda b: (0, 0)),          # b1
        pl.BlockSpec((d_inner, D), lambda b: (0, 0)),          # w2
        pl.BlockSpec((6, 1, D), lambda b: (0, 0, 0)),          # fcb/LN/b2 slab
    ]
    out_specs = (
        pl.BlockSpec((1, L, D), lambda b: (b, 0, 0)),          # enc_output
        pl.BlockSpec((n_head, 1, L, L), lambda b: (0, b, 0, 0)),  # attention probs
    )
    out_shape = (
        jax.ShapeDtypeStruct((B, L, D), jnp.float32),
        jax.ShapeDtypeStruct((n_head, B, L, L), attn_dtype),
    )

    out, attn = pl.pallas_call(
        kernel,
        grid=(B,),                                  # batch axis; independent -> "parallel"
        in_specs=in_specs,
        out_specs=out_specs,
        out_shape=out_shape,
        compiler_params=pltpu.CompilerParams(
            dimension_semantics=("parallel",),
            vmem_limit_bytes=32 * 1024 * 1024,
        ),
    )(x, npm, km, wqkv, bqkv, fcw, w1, b1, w2, misc)

    # PyTorch returns attn of shape (n_head * B, L, L) with index = h * B + b.
    return out, attn.reshape(n_head * B, L, L).astype(jnp.float32)


# ----------------------------- Pure-JAX reference ----------------------------
# Mirrors the kernel's bf16 matmul inputs (f32 accumulation) so tolerances stay tight.

def ref_encoder_layer(x, npm, am, p, *, n_head, d_k, d_v):
    B, L, D = x.shape
    bf, f32 = jnp.bfloat16, jnp.float32

    def mm(a, w):
        return jnp.dot(a.astype(bf), w.astype(bf), preferred_element_type=f32)

    xf = x.reshape(B * L, D)
    q = (mm(xf, p["wq"]) + p["bq"]).reshape(B, L, n_head, d_k)
    k = (mm(xf, p["wk"]) + p["bk"]).reshape(B, L, n_head, d_k)
    v = (mm(xf, p["wv"]) + p["bv"]).reshape(B, L, n_head, d_v)
    s = jnp.einsum("blhd,bmhd->hblm", q.astype(bf), k.astype(bf),
                   preferred_element_type=f32) / (float(d_k) ** 0.5)
    s = jnp.where(am[None] > 0, -jnp.inf, s)
    attn = jax.nn.softmax(s, axis=-1)
    o = jnp.einsum("hblm,bmhd->blhd", attn.astype(bf), v.astype(bf),
                   preferred_element_type=f32).reshape(B * L, n_head * d_v)
    proj = mm(o, p["fcw"]) + p["fcb"]
    a = _layer_norm(proj + xf, p["ln1g"], p["ln1b"]) * npm.reshape(B * L, 1)
    hid = jnp.maximum(mm(a, p["w1"]) + p["b1"], 0.0)
    f = mm(hid, p["w2"]) + p["b2"]
    out = _layer_norm(f + a, p["ln2g"], p["ln2b"]) * npm.reshape(B * L, 1)
    return out.reshape(B, L, D), attn.reshape(n_head * B, L, L)


# ----------------------------- Main -------------------------------------------

if __name__ == "__main__":
    B, L = 2, 8
    d_model, d_inner = 32, 64
    n_head, d_k, d_v = 4, 8, 8

    key = jax.random.PRNGKey(0)
    ks = jax.random.split(key, 16)

    def nrm(k, shape):
        return (0.1 * jax.random.normal(k, shape)).astype(jnp.float32)

    params = {
        "wq": nrm(ks[0], (d_model, n_head * d_k)), "bq": nrm(ks[1], (1, n_head * d_k)),
        "wk": nrm(ks[2], (d_model, n_head * d_k)), "bk": nrm(ks[3], (1, n_head * d_k)),
        "wv": nrm(ks[4], (d_model, n_head * d_v)), "bv": nrm(ks[5], (1, n_head * d_v)),
        "fcw": nrm(ks[6], (n_head * d_v, d_model)), "fcb": nrm(ks[7], (1, d_model)),
        "ln1g": jnp.ones((1, d_model), jnp.float32), "ln1b": jnp.zeros((1, d_model), jnp.float32),
        "w1": nrm(ks[8], (d_model, d_inner)), "b1": nrm(ks[9], (1, d_inner)),
        "w2": nrm(ks[10], (d_inner, d_model)), "b2": nrm(ks[11], (1, d_model)),
        "ln2g": jnp.ones((1, d_model), jnp.float32), "ln2b": jnp.zeros((1, d_model), jnp.float32),
    }

    enc_input = jax.random.normal(ks[12], (B, L, d_model), jnp.float32)

    # Sequence lengths -> pad masks (second sequence padded beyond position 5).
    lengths = jnp.array([L, 5], dtype=jnp.int32)
    pos = jnp.arange(L)
    non_pad = (pos[None, :] < lengths[:, None]).astype(jnp.float32)        # (B, L)
    non_pad_mask = non_pad[:, :, None]                                     # (B, L, 1)
    slf_attn_mask = (1.0 - non_pad)[:, None, :] * jnp.ones((B, L, 1), jnp.float32)  # (B, L, L)

    out, attn = encoder_layer(enc_input, non_pad_mask, slf_attn_mask, params,
                              n_head=n_head, d_k=d_k, d_v=d_v)
    jax.block_until_ready((out, attn))

    ref_out, ref_attn = ref_encoder_layer(enc_input, non_pad_mask, slf_attn_mask, params,
                                          n_head=n_head, d_k=d_k, d_v=d_v)

    assert out.shape == (B, L, d_model)
    assert attn.shape == (n_head * B, L, L)
    # bf16 matmul inputs (f32 accumulation) + approx reciprocal -> loosened tolerance.
    assert jnp.allclose(out, ref_out, rtol=1e-2, atol=1e-2)
    assert jnp.allclose(attn, ref_attn, rtol=1e-2, atol=1e-2)

    print("KERNEL_OK")
</pallas_src>

<mosaic_0001>
module attributes {stable_mosaic.version = 11 : i64} {
  func.func @encoder_layer_kernel(%arg0: i32, %arg1: memref<1x8x32xf32, #tpu.memory_space<vmem>>, %arg2: memref<1x8x1xf32, #tpu.memory_space<vmem>>, %arg3: memref<1x1x8xf32, #tpu.memory_space<vmem>>, %arg4: memref<32x96xbf16, #tpu.memory_space<vmem>>, %arg5: memref<1x96xf32, #tpu.memory_space<vmem>>, %arg6: memref<32x32xbf16, #tpu.memory_space<vmem>>, %arg7: memref<32x64xbf16, #tpu.memory_space<vmem>>, %arg8: memref<1x64xf32, #tpu.memory_space<vmem>>, %arg9: memref<64x32xbf16, #tpu.memory_space<vmem>>, %arg10: memref<6x1x32xf32, #tpu.memory_space<vmem>>, %arg11: memref<1x8x32xf32, #tpu.memory_space<vmem>>, %arg12: memref<4x1x8x8xf32, #tpu.memory_space<vmem>>) attributes {dimension_semantics = [#tpu.dimension_semantics<parallel>], iteration_bounds = array<i64: 2>, scalar_prefetch = 0 : i64, scratch_operands = 0 : i64, tpu.core_type = #tpu.core_type<tc>, window_params = [{transform_indices = @transform_0, window_bounds = array<i64: 1, 8, 32>}, {transform_indices = @transform_1, window_bounds = array<i64: 1, 8, 1>}, {transform_indices = @transform_2, window_bounds = array<i64: 1, 1, 8>}, {pipeline_mode = #tpu.pipeline_mode<synchronous>, transform_indices = @transform_3, window_bounds = array<i64: 32, 96>}, {pipeline_mode = #tpu.pipeline_mode<synchronous>, transform_indices = @transform_4, window_bounds = array<i64: 1, 96>}, {pipeline_mode = #tpu.pipeline_mode<synchronous>, transform_indices = @transform_5, window_bounds = array<i64: 32, 32>}, {pipeline_mode = #tpu.pipeline_mode<synchronous>, transform_indices = @transform_6, window_bounds = array<i64: 32, 64>}, {pipeline_mode = #tpu.pipeline_mode<synchronous>, transform_indices = @transform_7, window_bounds = array<i64: 1, 64>}, {pipeline_mode = #tpu.pipeline_mode<synchronous>, transform_indices = @transform_8, window_bounds = array<i64: 64, 32>}, {pipeline_mode = #tpu.pipeline_mode<synchronous>, transform_indices = @transform_9, window_bounds = array<i64: 6, 1, 32>}, {transform_indices = @transform_10, window_bounds = array<i64: 1, 8, 32>}, {transform_indices = @transform_11, window_bounds = array<i64: 4, 1, 8, 8>}]} {
    %c0 = arith.constant 0 : index
    %c0_0 = arith.constant 0 : index
    %c0_1 = arith.constant 0 : index
    %0 = vector.load %arg1[%c0, %c0_0, %c0_1] : memref<1x8x32xf32, #tpu.memory_space<vmem>>, vector<1x8x32xf32>
    %1 = vector.shape_cast %0 : vector<1x8x32xf32> to vector<8x32xf32>
    %2 = arith.truncf %1 : vector<8x32xf32> to vector<8x32xbf16>
    %c0_2 = arith.constant 0 : index
    %c0_3 = arith.constant 0 : index
    %c0_4 = arith.constant 0 : index
    %3 = vector.load %arg2[%c0_2, %c0_3, %c0_4] : memref<1x8x1xf32, #tpu.memory_space<vmem>>, vector<1x8x1xf32>
    %4 = vector.shape_cast %3 : vector<1x8x1xf32> to vector<8x1xf32>
    %c0_5 = arith.constant 0 : index
    %c0_6 = arith.constant 0 : index
    %c0_7 = arith.constant 0 : index
    %5 = vector.load %arg3[%c0_5, %c0_6, %c0_7] : memref<1x1x8xf32, #tpu.memory_space<vmem>>, vector<1x1x8xf32>
    %6 = vector.shape_cast %5 : vector<1x1x8xf32> to vector<1x8xf32>
    %c0_8 = arith.constant 0 : index
    %c0_9 = arith.constant 0 : index
    %c0_10 = arith.constant 0 : index
    %7 = vector.load %arg10[%c0_8, %c0_9, %c0_10] : memref<6x1x32xf32, #tpu.memory_space<vmem>>, vector<1x1x32xf32>
    %8 = vector.shape_cast %7 : vector<1x1x32xf32> to vector<1x32xf32>
    %c1 = arith.constant 1 : index
    %c0_11 = arith.constant 0 : index
    %c0_12 = arith.constant 0 : index
    %9 = vector.load %arg10[%c1, %c0_11, %c0_12] : memref<6x1x32xf32, #tpu.memory_space<vmem>>, vector<1x1x32xf32>
    %10 = vector.shape_cast %9 : vector<1x1x32xf32> to vector<1x32xf32>
    %c2 = arith.constant 2 : index
    %c0_13 = arith.constant 0 : index
    %c0_14 = arith.constant 0 : index
    %11 = vector.load %arg10[%c2, %c0_13, %c0_14] : memref<6x1x32xf32, #tpu.memory_space<vmem>>, vector<1x1x32xf32>
    %12 = vector.shape_cast %11 : vector<1x1x32xf32> to vector<1x32xf32>
    %c3 = arith.constant 3 : index
    %c0_15 = arith.constant 0 : index
    %c0_16 = arith.constant 0 : index
    %13 = vector.load %arg10[%c3, %c0_15, %c0_16] : memref<6x1x32xf32, #tpu.memory_space<vmem>>, vector<1x1x32xf32>
    %14 = vector.shape_cast %13 : vector<1x1x32xf32> to vector<1x32xf32>
    %c4 = arith.constant 4 : index
    %c0_17 = arith.constant 0 : index
    %c0_18 = arith.constant 0 : index
    %15 = vector.load %arg10[%c4, %c0_17, %c0_18] : memref<6x1x32xf32, #tpu.memory_space<vmem>>, vector<1x1x32xf32>
    %16 = vector.shape_cast %15 : vector<1x1x32xf32> to vector<1x32xf32>
    %c5 = arith.constant 5 : index
    %c0_19 = arith.constant 0 : index
    %c0_20 = arith.constant 0 : index
    %17 = vector.load %arg10[%c5, %c0_19, %c0_20] : memref<6x1x32xf32, #tpu.memory_space<vmem>>, vector<1x1x32xf32>
    %18 = vector.shape_cast %17 : vector<1x1x32xf32> to vector<1x32xf32>
    %c0_21 = arith.constant 0 : index
    %c0_22 = arith.constant 0 : index
    %19 = vector.load %arg4[%c0_21, %c0_22] : memref<32x96xbf16, #tpu.memory_space<vmem>>, vector<32x96xbf16>
    %cst = arith.constant dense<0.000000e+00> : vector<8x96xf32>
    %20 = tpu.matmul %2, %19, %cst {dimension_numbers = #tpu.dot_dimension_numbers<[1], [0], [0], [1], [0, 0, 1, 1], [], []>} : vector<8x32xbf16>, vector<32x96xbf16>, vector<8x96xf32> -> vector<8x96xf32>
    %c0_23 = arith.constant 0 : index
    %c0_24 = arith.constant 0 : index
    %21 = vector.load %arg5[%c0_23, %c0_24] : memref<1x96xf32, #tpu.memory_space<vmem>>, vector<1x96xf32>
    %22 = vector.broadcast %21 : vector<1x96xf32> to vector<8x96xf32>
    %23 = arith.addf %20, %22 : vector<8x96xf32>
    %24 = vector.extract_strided_slice %23 {offsets = [0, 0], sizes = [8, 32], strides = [1, 1]} : vector<8x96xf32> to vector<8x32xf32>
    %cst_25 = arith.constant 0.353553385 : f32
    %25 = vector.broadcast %cst_25 : f32 to vector<8x32xf32>
    %26 = arith.mulf %24, %25 : vector<8x32xf32>
    %27 = arith.truncf %26 : vector<8x32xf32> to vector<8x32xbf16>
    %28 = vector.extract_strided_slice %23 {offsets = [0, 32], sizes = [8, 32], strides = [1, 1]} : vector<8x96xf32> to vector<8x32xf32>
    %29 = arith.truncf %28 : vector<8x32xf32> to vector<8x32xbf16>
    %30 = vector.extract_strided_slice %23 {offsets = [0, 64], sizes = [8, 32], strides = [1, 1]} : vector<8x96xf32> to vector<8x32xf32>
    %31 = arith.truncf %30 : vector<8x32xf32> to vector<8x32xbf16>
    %32 = vector.extract_strided_slice %27 {offsets = [0, 0], sizes = [8, 8], strides = [1, 1]} : vector<8x32xbf16> to vector<8x8xbf16>
    %33 = vector.extract_strided_slice %29 {offsets = [0, 0], sizes = [8, 8], strides = [1, 1]} : vector<8x32xbf16> to vector<8x8xbf16>
    %34 = vector.extract_strided_slice %31 {offsets = [0, 0], sizes = [8, 8], strides = [1, 1]} : vector<8x32xbf16> to vector<8x8xbf16>
    %cst_26 = arith.constant dense<0.000000e+00> : vector<8x8xf32>
    %35 = tpu.matmul %32, %33, %cst_26 {dimension_numbers = #tpu.dot_dimension_numbers<[1], [1], [0], [0], [0, 0, 1, 0], [], []>} : vector<8x8xbf16>, vector<8x8xbf16>, vector<8x8xf32> -> vector<8x8xf32>
    %cst_27 = arith.constant 0.000000e+00 : f32
    %36 = vector.broadcast %cst_27 : f32 to vector<1x8xf32>
    %37 = arith.cmpf ogt, %6, %36 : vector<1x8xf32>
    %cst_28 = arith.constant 0xFF800000 : f32
    %38 = vector.shape_cast %37 : vector<1x8xi1> to vector<1x8xi1>
    %39 = vector.broadcast %38 : vector<1x8xi1> to vector<8x8xi1>
    %40 = vector.broadcast %cst_28 : f32 to vector<8x8xf32>
    %41 = arith.select %39, %40, %35 : vector<8x8xi1>, vector<8x8xf32>
    %cst_29 = arith.constant dense<0xFF800000> : vector<8xf32>
    %42 = vector.multi_reduction <maximumf>, %41, %cst_29 [1] : vector<8x8xf32> to vector<8xf32>
    %43 = vector.shape_cast %42 : vector<8xf32> to vector<8x1xf32>
    %44 = vector.broadcast %43 : vector<8x1xf32> to vector<8x8xf32>
    %45 = arith.subf %41, %44 : vector<8x8xf32>
    %46 = math.exp %45 : vector<8x8xf32>
    %cst_30 = arith.constant dense<0.000000e+00> : vector<8xf32>
    %47 = vector.multi_reduction <add>, %46, %cst_30 [1] : vector<8x8xf32> to vector<8xf32>
    %48 = vector.shape_cast %47 : vector<8xf32> to vector<8x1xf32>
    %49 = tpu.reciprocal %48 {approx = true} : vector<8x1xf32> -> vector<8x1xf32>
    %50 = vector.broadcast %49 : vector<8x1xf32> to vector<8x8xf32>
    %51 = arith.mulf %46, %50 : vector<8x8xf32>
    %c0_31 = arith.constant 0 : index
    %c0_32 = arith.constant 0 : index
    %c0_33 = arith.constant 0 : index
    %c0_34 = arith.constant 0 : index
    %52 = vector.load %arg12[%c0_31, %c0_32, %c0_33, %c0_34] : memref<4x1x8x8xf32, #tpu.memory_space<vmem>>, vector<1x1x8x8xf32>
    %53 = vector.shape_cast %52 : vector<1x1x8x8xf32> to vector<8x8xf32>
    %54 = vector.shape_cast %51 : vector<8x8xf32> to vector<1x1x8x8xf32>
    tpu.vector_store %arg12[%c0_31, %c0_32, %c0_33, %c0_34], %54 {strides = array<i32>} : memref<4x1x8x8xf32, #tpu.memory_space<vmem>>, vector<1x1x8x8xf32>,
    %55 = arith.truncf %51 : vector<8x8xf32> to vector<8x8xbf16>
    %cst_35 = arith.constant dense<0.000000e+00> : vector<8x8xf32>
    %56 = tpu.matmul %55, %34, %cst_35 {dimension_numbers = #tpu.dot_dimension_numbers<[1], [0], [0], [1], [0, 0, 1, 1], [], []>} : vector<8x8xbf16>, vector<8x8xbf16>, vector<8x8xf32> -> vector<8x8xf32>
    %57 = vector.extract_strided_slice %27 {offsets = [0, 8], sizes = [8, 8], strides = [1, 1]} : vector<8x32xbf16> to vector<8x8xbf16>
    %58 = vector.extract_strided_slice %29 {offsets = [0, 8], sizes = [8, 8], strides = [1, 1]} : vector<8x32xbf16> to vector<8x8xbf16>
    %59 = vector.extract_strided_slice %31 {offsets = [0, 8], sizes = [8, 8], strides = [1, 1]} : vector<8x32xbf16> to vector<8x8xbf16>
    %cst_36 = arith.constant dense<0.000000e+00> : vector<8x8xf32>
    %60 = tpu.matmul %57, %58, %cst_36 {dimension_numbers = #tpu.dot_dimension_numbers<[1], [1], [0], [0], [0, 0, 1, 0], [], []>} : vector<8x8xbf16>, vector<8x8xbf16>, vector<8x8xf32> -> vector<8x8xf32>
    %cst_37 = arith.constant 0.000000e+00 : f32
    %61 = vector.broadcast %cst_37 : f32 to vector<1x8xf32>
    %62 = arith.cmpf ogt, %6, %61 : vector<1x8xf32>
    %cst_38 = arith.constant 0xFF800000 : f32
    %63 = vector.shape_cast %62 : vector<1x8xi1> to vector<1x8xi1>
    %64 = vector.broadcast %63 : vector<1x8xi1> to vector<8x8xi1>
    %65 = vector.broadcast %cst_38 : f32 to vector<8x8xf32>
    %66 = arith.select %64, %65, %60 : vector<8x8xi1>, vector<8x8xf32>
    %cst_39 = arith.constant dense<0xFF800000> : vector<8xf32>
    %67 = vector.multi_reduction <maximumf>, %66, %cst_39 [1] : vector<8x8xf32> to vector<8xf32>
    %68 = vector.shape_cast %67 : vector<8xf32> to vector<8x1xf32>
    %69 = vector.broadcast %68 : vector<8x1xf32> to vector<8x8xf32>
    %70 = arith.subf %66, %69 : vector<8x8xf32>
    %71 = math.exp %70 : vector<8x8xf32>
    %cst_40 = arith.constant dense<0.000000e+00> : vector<8xf32>
    %72 = vector.multi_reduction <add>, %71, %cst_40 [1] : vector<8x8xf32> to vector<8xf32>
    %73 = vector.shape_cast %72 : vector<8xf32> to vector<8x1xf32>
    %74 = tpu.reciprocal %73 {approx = true} : vector<8x1xf32> -> vector<8x1xf32>
    %75 = vector.broadcast %74 : vector<8x1xf32> to vector<8x8xf32>
    %76 = arith.mulf %71, %75 : vector<8x8xf32>
    %c1_41 = arith.constant 1 : index
    %c0_42 = arith.constant 0 : index
    %c0_43 = arith.constant 0 : index
    %c0_44 = arith.constant 0 : index
    %77 = vector.load %arg12[%c1_41, %c0_42, %c0_43, %c0_44] : memref<4x1x8x8xf32, #tpu.memory_space<vmem>>, vector<1x1x8x8xf32>
    %78 = vector.shape_cast %77 : vector<1x1x8x8xf32> to vector<8x8xf32>
    %79 = vector.shape_cast %76 : vector<8x8xf32> to vector<1x1x8x8xf32>
    tpu.vector_store %arg12[%c1_41, %c0_42, %c0_43, %c0_44], %79 {strides = array<i32>} : memref<4x1x8x8xf32, #tpu.memory_space<vmem>>, vector<1x1x8x8xf32>,
    %80 = arith.truncf %76 : vector<8x8xf32> to vector<8x8xbf16>
    %cst_45 = arith.constant dense<0.000000e+00> : vector<8x8xf32>
    %81 = tpu.matmul %80, %59, %cst_45 {dimension_numbers = #tpu.dot_dimension_numbers<[1], [0], [0], [1], [0, 0, 1, 1], [], []>} : vector<8x8xbf16>, vector<8x8xbf16>, vector<8x8xf32> -> vector<8x8xf32>
    %82 = vector.extract_strided_slice %27 {offsets = [0, 16], sizes = [8, 8], strides = [1, 1]} : vector<8x32xbf16> to vector<8x8xbf16>
    %83 = vector.extract_strided_slice %29 {offsets = [0, 16], sizes = [8, 8], strides = [1, 1]} : vector<8x32xbf16> to vector<8x8xbf16>
    %84 = vector.extract_strided_slice %31 {offsets = [0, 16], sizes = [8, 8], strides = [1, 1]} : vector<8x32xbf16> to vector<8x8xbf16>
    %cst_46 = arith.constant dense<0.000000e+00> : vector<8x8xf32>
    %85 = tpu.matmul %82, %83, %cst_46 {dimension_numbers = #tpu.dot_dimension_numbers<[1], [1], [0], [0], [0, 0, 1, 0], [], []>} : vector<8x8xbf16>, vector<8x8xbf16>, vector<8x8xf32> -> vector<8x8xf32>
    %cst_47 = arith.constant 0.000000e+00 : f32
    %86 = vector.broadcast %cst_47 : f32 to vector<1x8xf32>
    %87 = arith.cmpf ogt, %6, %86 : vector<1x8xf32>
    %cst_48 = arith.constant 0xFF800000 : f32
    %88 = vector.shape_cast %87 : vector<1x8xi1> to vector<1x8xi1>
    %89 = vector.broadcast %88 : vector<1x8xi1> to vector<8x8xi1>
    %90 = vector.broadcast %cst_48 : f32 to vector<8x8xf32>
    %91 = arith.select %89, %90, %85 : vector<8x8xi1>, vector<8x8xf32>
    %cst_49 = arith.constant dense<0xFF800000> : vector<8xf32>
    %92 = vector.multi_reduction <maximumf>, %91, %cst_49 [1] : vector<8x8xf32> to vector<8xf32>
    %93 = vector.shape_cast %92 : vector<8xf32> to vector<8x1xf32>
    %94 = vector.broadcast %93 : vector<8x1xf32> to vector<8x8xf32>
    %95 = arith.subf %91, %94 : vector<8x8xf32>
    %96 = math.exp %95 : vector<8x8xf32>
    %cst_50 = arith.constant dense<0.000000e+00> : vector<8xf32>
    %97 = vector.multi_reduction <add>, %96, %cst_50 [1] : vector<8x8xf32> to vector<8xf32>
    %98 = vector.shape_cast %97 : vector<8xf32> to vector<8x1xf32>
    %99 = tpu.reciprocal %98 {approx = true} : vector<8x1xf32> -> vector<8x1xf32>
    %100 = vector.broadcast %99 : vector<8x1xf32> to vector<8x8xf32>
    %101 = arith.mulf %96, %100 : vector<8x8xf32>
    %c2_51 = arith.constant 2 : index
    %c0_52 = arith.constant 0 : index
    %c0_53 = arith.constant 0 : index
    %c0_54 = arith.constant 0 : index
    %102 = vector.load %arg12[%c2_51, %c0_52, %c0_53, %c0_54] : memref<4x1x8x8xf32, #tpu.memory_space<vmem>>, vector<1x1x8x8xf32>
    %103 = vector.shape_cast %102 : vector<1x1x8x8xf32> to vector<8x8xf32>
    %104 = vector.shape_cast %101 : vector<8x8xf32> to vector<1x1x8x8xf32>
    tpu.vector_store %arg12[%c2_51, %c0_52, %c0_53, %c0_54], %104 {strides = array<i32>} : memref<4x1x8x8xf32, #tpu.memory_space<vmem>>, vector<1x1x8x8xf32>,
    %105 = arith.truncf %101 : vector<8x8xf32> to vector<8x8xbf16>
    %cst_55 = arith.constant dense<0.000000e+00> : vector<8x8xf32>
    %106 = tpu.matmul %105, %84, %cst_55 {dimension_numbers = #tpu.dot_dimension_numbers<[1], [0], [0], [1], [0, 0, 1, 1], [], []>} : vector<8x8xbf16>, vector<8x8xbf16>, vector<8x8xf32> -> vector<8x8xf32>
    %107 = vector.extract_strided_slice %27 {offsets = [0, 24], sizes = [8, 8], strides = [1, 1]} : vector<8x32xbf16> to vector<8x8xbf16>
    %108 = vector.extract_strided_slice %29 {offsets = [0, 24], sizes = [8, 8], strides = [1, 1]} : vector<8x32xbf16> to vector<8x8xbf16>
    %109 = vector.extract_strided_slice %31 {offsets = [0, 24], sizes = [8, 8], strides = [1, 1]} : vector<8x32xbf16> to vector<8x8xbf16>
    %cst_56 = arith.constant dense<0.000000e+00> : vector<8x8xf32>
    %110 = tpu.matmul %107, %108, %cst_56 {dimension_numbers = #tpu.dot_dimension_numbers<[1], [1], [0], [0], [0, 0, 1, 0], [], []>} : vector<8x8xbf16>, vector<8x8xbf16>, vector<8x8xf32> -> vector<8x8xf32>
    %cst_57 = arith.constant 0.000000e+00 : f32
    %111 = vector.broadcast %cst_57 : f32 to vector<1x8xf32>
    %112 = arith.cmpf ogt, %6, %111 : vector<1x8xf32>
    %cst_58 = arith.constant 0xFF800000 : f32
    %113 = vector.shape_cast %112 : vector<1x8xi1> to vector<1x8xi1>
    %114 = vector.broadcast %113 : vector<1x8xi1> to vector<8x8xi1>
    %115 = vector.broadcast %cst_58 : f32 to vector<8x8xf32>
    %116 = arith.select %114, %115, %110 : vector<8x8xi1>, vector<8x8xf32>
    %cst_59 = arith.constant dense<0xFF800000> : vector<8xf32>
    %117 = vector.multi_reduction <maximumf>, %116, %cst_59 [1] : vector<8x8xf32> to vector<8xf32>
    %118 = vector.shape_cast %117 : vector<8xf32> to vector<8x1xf32>
    %119 = vector.broadcast %118 : vector<8x1xf32> to vector<8x8xf32>
    %120 = arith.subf %116, %119 : vector<8x8xf32>
    %121 = math.exp %120 : vector<8x8xf32>
    %cst_60 = arith.constant dense<0.000000e+00> : vector<8xf32>
    %122 = vector.multi_reduction <add>, %121, %cst_60 [1] : vector<8x8xf32> to vector<8xf32>
    %123 = vector.shape_cast %122 : vector<8xf32> to vector<8x1xf32>
    %124 = tpu.reciprocal %123 {approx = true} : vector<8x1xf32> -> vector<8x1xf32>
    %125 = vector.broadcast %124 : vector<8x1xf32> to vector<8x8xf32>
    %126 = arith.mulf %121, %125 : vector<8x8xf32>
    %c3_61 = arith.constant 3 : index
    %c0_62 = arith.constant 0 : index
    %c0_63 = arith.constant 0 : index
    %c0_64 = arith.constant 0 : index
    %127 = vector.load %arg12[%c3_61, %c0_62, %c0_63, %c0_64] : memref<4x1x8x8xf32, #tpu.memory_space<vmem>>, vector<1x1x8x8xf32>
    %128 = vector.shape_cast %127 : vector<1x1x8x8xf32> to vector<8x8xf32>
    %129 = vector.shape_cast %126 : vector<8x8xf32> to vector<1x1x8x8xf32>
    tpu.vector_store %arg12[%c3_61, %c0_62, %c0_63, %c0_64], %129 {strides = array<i32>} : memref<4x1x8x8xf32, #tpu.memory_space<vmem>>, vector<1x1x8x8xf32>,
    %130 = arith.truncf %126 : vector<8x8xf32> to vector<8x8xbf16>
    %cst_65 = arith.constant dense<0.000000e+00> : vector<8x8xf32>
    %131 = tpu.matmul %130, %109, %cst_65 {dimension_numbers = #tpu.dot_dimension_numbers<[1], [0], [0], [1], [0, 0, 1, 1], [], []>} : vector<8x8xbf16>, vector<8x8xbf16>, vector<8x8xf32> -> vector<8x8xf32>
    %132 = tpu.concatenate %56, %81, %106, %131 in 1 : vector<8x8xf32>, vector<8x8xf32>, vector<8x8xf32>, vector<8x8xf32> -> vector<8x32xf32>
    %133 = arith.truncf %132 : vector<8x32xf32> to vector<8x32xbf16>
    %c0_66 = arith.constant 0 : index
    %c0_67 = arith.constant 0 : index
    %134 = vector.load %arg6[%c0_66, %c0_67] : memref<32x32xbf16, #tpu.memory_space<vmem>>, vector<32x32xbf16>
    %cst_68 = arith.constant dense<0.000000e+00> : vector<8x32xf32>
    %135 = tpu.matmul %133, %134, %cst_68 {dimension_numbers = #tpu.dot_dimension_numbers<[1], [0], [0], [1], [0, 0, 1, 1], [], []>} : vector<8x32xbf16>, vector<32x32xbf16>, vector<8x32xf32> -> vector<8x32xf32>
    %136 = vector.broadcast %8 : vector<1x32xf32> to vector<8x32xf32>
    %137 = arith.addf %135, %136 : vector<8x32xf32>
    %138 = arith.addf %137, %1 : vector<8x32xf32>
    %cst_69 = arith.constant dense<0.000000e+00> : vector<8xf32>
    %139 = vector.multi_reduction <add>, %138, %cst_69 [1] : vector<8x32xf32> to vector<8xf32>
    %140 = vector.shape_cast %139 : vector<8xf32> to vector<8x1xf32>
    %cst_70 = arith.constant 3.200000e+01 : f32
    %141 = vector.broadcast %cst_70 : f32 to vector<8x1xf32>
    %142 = arith.divf %140, %141 : vector<8x1xf32>
    %143 = vector.broadcast %142 : vector<8x1xf32> to vector<8x32xf32>
    %144 = arith.subf %138, %143 : vector<8x32xf32>
    %145 = arith.mulf %144, %144 : vector<8x32xf32>
    %cst_71 = arith.constant dense<0.000000e+00> : vector<8xf32>
    %146 = vector.multi_reduction <add>, %145, %cst_71 [1] : vector<8x32xf32> to vector<8xf32>
    %147 = vector.shape_cast %146 : vector<8xf32> to vector<8x1xf32>
    %cst_72 = arith.constant 3.200000e+01 : f32
    %148 = vector.broadcast %cst_72 : f32 to vector<8x1xf32>
    %149 = arith.divf %147, %148 : vector<8x1xf32>
    %150 = vector.broadcast %142 : vector<8x1xf32> to vector<8x32xf32>
    %151 = arith.subf %138, %150 : vector<8x32xf32>
    %cst_73 = arith.constant 9.99999974E-6 : f32
    %152 = vector.broadcast %cst_73 : f32 to vector<8x1xf32>
    %153 = arith.addf %149, %152 : vector<8x1xf32>
    %154 = math.rsqrt %153 : vector<8x1xf32>
    %155 = vector.broadcast %154 : vector<8x1xf32> to vector<8x32xf32>
    %156 = arith.mulf %151, %155 : vector<8x32xf32>
    %157 = vector.broadcast %10 : vector<1x32xf32> to vector<8x32xf32>
    %158 = arith.mulf %156, %157 : vector<8x32xf32>
    %159 = vector.broadcast %12 : vector<1x32xf32> to vector<8x32xf32>
    %160 = arith.addf %158, %159 : vector<8x32xf32>
    %161 = vector.broadcast %4 : vector<8x1xf32> to vector<8x32xf32>
    %162 = arith.mulf %160, %161 : vector<8x32xf32>
    %163 = arith.truncf %162 : vector<8x32xf32> to vector<8x32xbf16>
    %c0_74 = arith.constant 0 : index
    %c0_75 = arith.constant 0 : index
    %164 = vector.load %arg7[%c0_74, %c0_75] : memref<32x64xbf16, #tpu.memory_space<vmem>>, vector<32x64xbf16>
    %cst_76 = arith.constant dense<0.000000e+00> : vector<8x64xf32>
    %165 = tpu.matmul %163, %164, %cst_76 {dimension_numbers = #tpu.dot_dimension_numbers<[1], [0], [0], [1], [0, 0, 1, 1], [], []>} : vector<8x32xbf16>, vector<32x64xbf16>, vector<8x64xf32> -> vector<8x64xf32>
    %c0_77 = arith.constant 0 : index
    %c0_78 = arith.constant 0 : index
    %166 = vector.load %arg8[%c0_77, %c0_78] : memref<1x64xf32, #tpu.memory_space<vmem>>, vector<1x64xf32>
    %167 = vector.broadcast %166 : vector<1x64xf32> to vector<8x64xf32>
    %168 = arith.addf %165, %167 : vector<8x64xf32>
    %cst_79 = arith.constant 0.000000e+00 : f32
    %169 = vector.broadcast %cst_79 : f32 to vector<8x64xf32>
    %170 = arith.maximumf %168, %169 : vector<8x64xf32>
    %171 = arith.truncf %170 : vector<8x64xf32> to vector<8x64xbf16>
    %c0_80 = arith.constant 0 : index
    %c0_81 = arith.constant 0 : index
    %172 = vector.load %arg9[%c0_80, %c0_81] : memref<64x32xbf16, #tpu.memory_space<vmem>>, vector<64x32xbf16>
    %cst_82 = arith.constant dense<0.000000e+00> : vector<8x32xf32>
    %173 = tpu.matmul %171, %172, %cst_82 {dimension_numbers = #tpu.dot_dimension_numbers<[1], [0], [0], [1], [0, 0, 1, 1], [], []>} : vector<8x64xbf16>, vector<64x32xbf16>, vector<8x32xf32> -> vector<8x32xf32>
    %174 = vector.broadcast %14 : vector<1x32xf32> to vector<8x32xf32>
    %175 = arith.addf %173, %174 : vector<8x32xf32>
    %176 = arith.addf %175, %162 : vector<8x32xf32>
    %cst_83 = arith.constant dense<0.000000e+00> : vector<8xf32>
    %177 = vector.multi_reduction <add>, %176, %cst_83 [1] : vector<8x32xf32> to vector<8xf32>
    %178 = vector.shape_cast %177 : vector<8xf32> to vector<8x1xf32>
    %cst_84 = arith.constant 3.200000e+01 : f32
    %179 = vector.broadcast %cst_84 : f32 to vector<8x1xf32>
    %180 = arith.divf %178, %179 : vector<8x1xf32>
    %181 = vector.broadcast %180 : vector<8x1xf32> to vector<8x32xf32>
    %182 = arith.subf %176, %181 : vector<8x32xf32>
    %183 = arith.mulf %182, %182 : vector<8x32xf32>
    %cst_85 = arith.constant dense<0.000000e+00> : vector<8xf32>
    %184 = vector.multi_reduction <add>, %183, %cst_85 [1] : vector<8x32xf32> to vector<8xf32>
    %185 = vector.shape_cast %184 : vector<8xf32> to vector<8x1xf32>
    %cst_86 = arith.constant 3.200000e+01 : f32
    %186 = vector.broadcast %cst_86 : f32 to vector<8x1xf32>
    %187 = arith.divf %185, %186 : vector<8x1xf32>
    %188 = vector.broadcast %180 : vector<8x1xf32> to vector<8x32xf32>
    %189 = arith.subf %176, %188 : vector<8x32xf32>
    %cst_87 = arith.constant 9.99999974E-6 : f32
    %190 = vector.broadcast %cst_87 : f32 to vector<8x1xf32>
    %191 = arith.addf %187, %190 : vector<8x1xf32>
    %192 = math.rsqrt %191 : vector<8x1xf32>
    %193 = vector.broadcast %192 : vector<8x1xf32> to vector<8x32xf32>
    %194 = arith.mulf %189, %193 : vector<8x32xf32>
    %195 = vector.broadcast %16 : vector<1x32xf32> to vector<8x32xf32>
    %196 = arith.mulf %194, %195 : vector<8x32xf32>
    %197 = vector.broadcast %18 : vector<1x32xf32> to vector<8x32xf32>
    %198 = arith.addf %196, %197 : vector<8x32xf32>
    %199 = vector.broadcast %4 : vector<8x1xf32> to vector<8x32xf32>
    %200 = arith.mulf %198, %199 : vector<8x32xf32>
    %c0_88 = arith.constant 0 : index
    %c0_89 = arith.constant 0 : index
    %c0_90 = arith.constant 0 : index
    %201 = vector.load %arg11[%c0_88, %c0_89, %c0_90] : memref<1x8x32xf32, #tpu.memory_space<vmem>>, vector<1x8x32xf32>
    %202 = vector.shape_cast %201 : vector<1x8x32xf32> to vector<8x32xf32>
    %203 = vector.shape_cast %200 : vector<8x32xf32> to vector<1x8x32xf32>
    tpu.vector_store %arg11[%c0_88, %c0_89, %c0_90], %203 {strides = array<i32>} : memref<1x8x32xf32, #tpu.memory_space<vmem>>, vector<1x8x32xf32>,
    return
  }
  func.func @transform_0(%arg0: i32) -> (i32, i32, i32) {
    %c0_i32 = arith.constant 0 : i32
    %c0_i32_0 = arith.constant 0 : i32
    %c0_i32_1 = arith.constant 0 : i32
    return %arg0, %c0_i32, %c0_i32_0 : i32, i32, i32
  }
  func.func @transform_1(%arg0: i32) -> (i32, i32, i32) {
    %c0_i32 = arith.constant 0 : i32
    %c0_i32_0 = arith.constant 0 : i32
    %c0_i32_1 = arith.constant 0 : i32
    return %arg0, %c0_i32, %c0_i32_0 : i32, i32, i32
  }
  func.func @transform_2(%arg0: i32) -> (i32, i32, i32) {
    %c0_i32 = arith.constant 0 : i32
    %c0_i32_0 = arith.constant 0 : i32
    %c0_i32_1 = arith.constant 0 : i32
    return %arg0, %c0_i32, %c0_i32_0 : i32, i32, i32
  }
  func.func @transform_3(%arg0: i32) -> (i32, i32) {
    %c0_i32 = arith.constant 0 : i32
    %c0_i32_0 = arith.constant 0 : i32
    %c0_i32_1 = arith.constant 0 : i32
    return %c0_i32, %c0_i32_0 : i32, i32
  }
  func.func @transform_4(%arg0: i32) -> (i32, i32) {
    %c0_i32 = arith.constant 0 : i32
    %c0_i32_0 = arith.constant 0 : i32
    %c0_i32_1 = arith.constant 0 : i32
    return %c0_i32, %c0_i32_0 : i32, i32
  }
  func.func @transform_5(%arg0: i32) -> (i32, i32) {
    %c0_i32 = arith.constant 0 : i32
    %c0_i32_0 = arith.constant 0 : i32
    %c0_i32_1 = arith.constant 0 : i32
    return %c0_i32, %c0_i32_0 : i32, i32
  }
  func.func @transform_6(%arg0: i32) -> (i32, i32) {
    %c0_i32 = arith.constant 0 : i32
    %c0_i32_0 = arith.constant 0 : i32
    %c0_i32_1 = arith.constant 0 : i32
    return %c0_i32, %c0_i32_0 : i32, i32
  }
  func.func @transform_7(%arg0: i32) -> (i32, i32) {
    %c0_i32 = arith.constant 0 : i32
    %c0_i32_0 = arith.constant 0 : i32
    %c0_i32_1 = arith.constant 0 : i32
    return %c0_i32, %c0_i32_0 : i32, i32
  }
  func.func @transform_8(%arg0: i32) -> (i32, i32) {
    %c0_i32 = arith.constant 0 : i32
    %c0_i32_0 = arith.constant 0 : i32
    %c0_i32_1 = arith.constant 0 : i32
    return %c0_i32, %c0_i32_0 : i32, i32
  }
  func.func @transform_9(%arg0: i32) -> (i32, i32, i32) {
    %c0_i32 = arith.constant 0 : i32
    %c0_i32_0 = arith.constant 0 : i32
    %c0_i32_1 = arith.constant 0 : i32
    %c0_i32_2 = arith.constant 0 : i32
    return %c0_i32, %c0_i32_0, %c0_i32_1 : i32, i32, i32
  }
  func.func @transform_10(%arg0: i32) -> (i32, i32, i32) {
    %c0_i32 = arith.constant 0 : i32
    %c0_i32_0 = arith.constant 0 : i32
    %c0_i32_1 = arith.constant 0 : i32
    return %arg0, %c0_i32, %c0_i32_0 : i32, i32, i32
  }
  func.func @transform_11(%arg0: i32) -> (i32, i32, i32, i32) {
    %c0_i32 = arith.constant 0 : i32
    %c0_i32_0 = arith.constant 0 : i32
    %c0_i32_1 = arith.constant 0 : i32
    %c0_i32_2 = arith.constant 0 : i32
    return %c0_i32, %arg0, %c0_i32_0, %c0_i32_1 : i32, i32, i32, i32
  }
}

</mosaic_0001>

<llo_original>
// kernel: tpu_custom_call.1
$region0: #{tpu_custom_call.1}
  #allocation0 [shape = 'u32[]', space=smem, size = 0x4, offset = 0x4, fixed_abs, tag = 'smem constant byte address 0x4 - core index']
  #allocation1 [shape = 'u32[144,128]{1,0:T(1,128)}', space=vmem, size = 0x12000, scoped, tag = 'internal scratch']
  %s0 = inlined_call_operand.vmem [shape: f32[2,8,32], index: 0, kind: input, shape index: {}]
  %s1 = inlined_call_operand.vmem [shape: f32[2,8,1], index: 1, kind: input, shape index: {}]
  %s2 = inlined_call_operand.hbm [shape: f32[2,1,8], index: 2, kind: input, shape index: {}]
  %s3 = inlined_call_operand.vmem [shape: bf16[32,96], index: 3, kind: input, shape index: {}]
  %s4 = inlined_call_operand.hbm [shape: f32[1,96], index: 4, kind: input, shape index: {}]
  %s5 = inlined_call_operand.vmem [shape: bf16[32,32], index: 5, kind: input, shape index: {}]
  %s6 = inlined_call_operand.vmem [shape: bf16[32,64], index: 6, kind: input, shape index: {}]
  %s7 = inlined_call_operand.hbm [shape: f32[1,64], index: 7, kind: input, shape index: {}]
  %s8 = inlined_call_operand.vmem [shape: bf16[64,32], index: 8, kind: input, shape index: {}]
  %s9 = inlined_call_operand.hbm [shape: f32[6,1,32], index: 9, kind: input, shape index: {}]
  %s10 = inlined_call_operand.hbm [shape: f32[2,8,32], index: 10, kind: output, shape index: {0}]
  %s11 = inlined_call_operand.hbm [shape: f32[4,2,8,8], index: 11, kind: output, shape index: {1}]
  %12 = xla_tuple %s10, %s11
  %s13 = sld [smem:[#allocation0]]
  $region97: #{tpu_custom_call.1} parent=0
    _
  %s15 = ssub.s32 1, %s13
  %s16 = scalar_select 0, %s15, %s13
  $region1: #{tpu_custom_call.1} parent=0
    #allocation2 [shape = 'u8[1024]{0}', space=vmem, size = 0x400, scoped, tag = 'input window, operand 2']
    #allocation3 [shape = 's32[2]{0}', space=sflag, size = 0x8, scoped, tag = 'scoped memory for tpu_custom_call.1']
    #allocation4 [shape = 's32[2]{0}', space=sflag, size = 0x8, scoped, tag = 'scoped memory for tpu_custom_call.1']
    #allocation5 [shape = 'u8[512]{0}', space=vmem, size = 0x400, scoped, tag = 'input window, operand 4, single buffered']
    #allocation6 [shape = 's32[1]{0}', space=sflag, size = 0x4, scoped, tag = 'scoped memory for tpu_custom_call.1']
    #allocation7 [shape = 'u8[512]{0}', space=vmem, size = 0x400, scoped, tag = 'input window, operand 7, single buffered']
    #allocation8 [shape = 'u8[3072]{0}', space=vmem, size = 0xc00, scoped, tag = 'input window, operand 9, single buffered']
    #allocation9 [shape = 's32[1]{0}', space=sflag, size = 0x4, scoped, tag = 'scoped memory for tpu_custom_call.1']
    #allocation10 [shape = 'u8[8192]{0}', space=vmem, size = 0x2000, scoped, tag = 'output window, operand 0']
    #allocation11 [shape = 'u8[32768]{0}', space=vmem, size = 0x8000, scoped, tag = 'output window, operand 1']
    #allocation12 [shape = 's32[2]{0}', space=sflag, size = 0x8, scoped, tag = 'scoped memory for tpu_custom_call.1']
    %17 = vsyncpa [#allocation3], 0
    %s18 = scalar_lea.sflag [#allocation3], 1
    %19 = vsyncpa %s18, 0
    %20 = vsyncpa [#allocation6], 0
    %21 = vsyncpa [#allocation9], 0
    %22 = vsyncpa [#allocation4], 0
    %s23 = scalar_lea.sflag [#allocation4], 1
    %24 = vsyncpa %s23, 0
    %25 = vsyncpa [#allocation12], 0
    %s26 = scalar_lea.sflag [#allocation12], 1
    %27 = vsyncpa %s26, 0
    loop: start=0, step=1, limit=4
    $region2: #{tpu_custom_call.1} parent=1 // loop_pre_header
      _
    $region3: #{tpu_custom_call.1} parent=1 // loop_header
      %s29 = sphi 0, %s33
      %p30 = scmp.ge.s32.totalorder %s29, 4
      %s39 = sphi 0, %s41
      %s42 = sphi 0, %s39
      %s43 = sphi 0, %s42
      %s59 = sphi 0, %s43
      %s65 = sphi 0, %s67
      %s68 = sphi 0, %s65
      %s69 = sphi 0, %s68
      %s85 = sphi 0, %s69
      %s91 = sphi 0, %s93
      %s94 = sphi 0, %s91
      %s95 = sphi 0, %s94
      %s111 = sphi 0, %s95
      %s115 = sphi 0, %s115
      %s117 = sphi 0, %s115
      %s118 = sphi 0, %s117
      %s132 = sphi 0, %s118
      %s136 = sphi 0, %s136
      %s138 = sphi 0, %s136
      %s139 = sphi 0, %s138
      %s153 = sphi 0, %s139
      %s157 = sphi 0, %s157
      %s159 = sphi 0, %s157
      %s160 = sphi 0, %s159
      %s174 = sphi 0, %s160
      %s178 = sphi 0, %s178
      %s180 = sphi 0, %s178
      %s181 = sphi 0, %s180
      %s195 = sphi 0, %s181
      %s199 = sphi 0, %s199
      %s201 = sphi 0, %s199
      %s202 = sphi 0, %s201
      %s216 = sphi 0, %s202
      %s220 = sphi 0, %s220
      %s222 = sphi 0, %s220
      %s223 = sphi 0, %s222
      %s237 = sphi 0, %s223
      %s241 = sphi 0, %s241
      %s243 = sphi 0, %s241
      %s244 = sphi 0, %s243
      %s258 = sphi 0, %s244
      %s264 = sphi 0, %s266
      %s267 = sphi 0, %s264
      %s268 = sphi 0, %s267
      %s284 = sphi 0, %s268
      %s290 = sphi 0, %s292
      %s293 = sphi 0, %s290
      %s294 = sphi 0, %s293
      %s310 = sphi 0, %s294
    $region4: #{tpu_custom_call.1} parent=1 // loop_header_branch
      %32 = sbr.rel (%p30) target = $region8
    $region5: #{tpu_custom_call.1} parent=1 // loop_body
      %s34 = ssub.s32 %s29, 1
      %s35 = ssub.s32 %s29, 2
      %s36 = sadd.s32 %s29, 1
      %s37 = ssub.s32 %s29, %s36
      %p38 = scmp.eq.s32.totalorder %s37, 0
      %s40 = sadd.s32 %s39, 1
      %s41 = scalar_select %p38, %s39, %s40
      %p44 = pneg %p38
      %p45 = scmp.eq.s32.totalorder %s29, 1
      %p46 = por %p44, %p45
      %p47 = scmp.ne.s32.totalorder %s39, %s42
      %p48 = scmp.eq.s32.totalorder %s29, 0
      %p49 = por %p47, %p48
      %p50 = scmp.ne.s32.totalorder %s39, %s42
      %p51 = scmp.eq.s32.totalorder %s34, 1
      %p52 = por %p50, %p51
      %p53 = scmp.ne.s32.totalorder %s42, %s43
      %p54 = scmp.eq.s32.totalorder %s34, 0
      %p55 = por %p53, %p54
      %p56 = scmp.ne.s32.totalorder %s42, %s43
      %p57 = scmp.eq.s32.totalorder %s35, 1
      %p58 = por %p56, %p57
      %p60 = scmp.ne.s32.totalorder %s43, %s59
      %p61 = scmp.eq.s32.totalorder %s35, 0
      %p62 = por %p60, %p61
      %s63 = ssub.s32 %s29, %s36
      %p64 = scmp.eq.s32.totalorder %s63, 0
      %s66 = sadd.s32 %s65, 1
      %s67 = scalar_select %p64, %s65, %s66
      %p70 = pneg %p64
      %p71 = scmp.eq.s32.totalorder %s29, 1
      %p72 = por %p70, %p71
      %p73 = scmp.ne.s32.totalorder %s65, %s68
      %p74 = scmp.eq.s32.totalorder %s29, 0
      %p75 = por %p73, %p74
      %p76 = scmp.ne.s32.totalorder %s65, %s68
      %p77 = scmp.eq.s32.totalorder %s34, 1
      %p78 = por %p76, %p77
      %p79 = scmp.ne.s32.totalorder %s68, %s69
      %p80 = scmp.eq.s32.totalorder %s34, 0
      %p81 = por %p79, %p80
      %p82 = scmp.ne.s32.totalorder %s68, %s69
      %p83 = scmp.eq.s32.totalorder %s35, 1
      %p84 = por %p82, %p83
      %p86 = scmp.ne.s32.totalorder %s69, %s85
      %p87 = scmp.eq.s32.totalorder %s35, 0
      %p88 = por %p86, %p87
      %s89 = ssub.s32 %s29, %s36
      %p90 = scmp.eq.s32.totalorder %s89, 0
      %s92 = sadd.s32 %s91, 1
      %s93 = scalar_select %p90, %s91, %s92
      %p96 = pneg %p90
      %p97 = scmp.eq.s32.totalorder %s29, 1
      %p98 = por %p96, %p97
      %p99 = scmp.ne.s32.totalorder %s91, %s94
      %p100 = scmp.eq.s32.totalorder %s29, 0
      %p101 = por %p99, %p100
      %p102 = scmp.ne.s32.totalorder %s91, %s94
      %p103 = scmp.eq.s32.totalorder %s34, 1
      %p104 = por %p102, %p103
      %p105 = scmp.ne.s32.totalorder %s94, %s95
      %p106 = scmp.eq.s32.totalorder %s34, 0
      %p107 = por %p105, %p106
      %p108 = scmp.ne.s32.totalorder %s94, %s95
      %p109 = scmp.eq.s32.totalorder %s35, 1
      %p110 = por %p108, %p109
      %p112 = scmp.ne.s32.totalorder %s95, %s111
      %p113 = scmp.eq.s32.totalorder %s35, 0
      %p114 = por %p112, %p113
      %s116 = sadd.s32 %s115, 1
      %p119 = scmp.eq.s32.totalorder %s29, 1
      %p120 = scmp.ne.s32.totalorder %s115, %s117
      %p121 = scmp.eq.s32.totalorder %s29, 0
      %p122 = por %p120, %p121
      %p123 = scmp.ne.s32.totalorder %s115, %s117
      %p124 = scmp.eq.s32.totalorder %s34, 1
      %p125 = por %p123, %p124
      %p126 = scmp.ne.s32.totalorder %s117, %s118
      %p127 = scmp.eq.s32.totalorder %s34, 0
      %p128 = por %p126, %p127
      %p129 = scmp.ne.s32.totalorder %s117, %s118
      %p130 = scmp.eq.s32.totalorder %s35, 1
      %p131 = por %p129, %p130
      %p133 = scmp.ne.s32.totalorder %s118, %s132
      %p134 = scmp.eq.s32.totalorder %s35, 0
      %p135 = por %p133, %p134
      %s137 = sadd.s32 %s136, 1
      %p140 = scmp.eq.s32.totalorder %s29, 1
      %p141 = scmp.ne.s32.totalorder %s136, %s138
      %p142 = scmp.eq.s32.totalorder %s29, 0
      %p143 = por %p141, %p142
      %p144 = scmp.ne.s32.totalorder %s136, %s138
      %p145 = scmp.eq.s32.totalorder %s34, 1
      %p146 = por %p144, %p145
      %p147 = scmp.ne.s32.totalorder %s138, %s139
      %p148 = scmp.eq.s32.totalorder %s34, 0
      %p149 = por %p147, %p148
      %p150 = scmp.ne.s32.totalorder %s138, %s139
      %p151 = scmp.eq.s32.totalorder %s35, 1
      %p152 = por %p150, %p151
      %p154 = scmp.ne.s32.totalorder %s139, %s153
      %p155 = scmp.eq.s32.totalorder %s35, 0
      %p156 = por %p154, %p155
      %s158 = sadd.s32 %s157, 1
      %p161 = scmp.eq.s32.totalorder %s29, 1
      %p162 = scmp.ne.s32.totalorder %s157, %s159
      %p163 = scmp.eq.s32.totalorder %s29, 0
      %p164 = por %p162, %p163
      %p165 = scmp.ne.s32.totalorder %s157, %s159
      %p166 = scmp.eq.s32.totalorder %s34, 1
      %p167 = por %p165, %p166
      %p168 = scmp.ne.s32.totalorder %s159, %s160
      %p169 = scmp.eq.s32.totalorder %s34, 0
      %p170 = por %p168, %p169
      %p171 = scmp.ne.s32.totalorder %s159, %s160
      %p172 = scmp.eq.s32.totalorder %s35, 1
      %p173 = por %p171, %p172
      %p175 = scmp.ne.s32.totalorder %s160, %s174
      %p176 = scmp.eq.s32.totalorder %s35, 0
      %p177 = por %p175, %p176
      %s179 = sadd.s32 %s178, 1
      %p182 = scmp.eq.s32.totalorder %s29, 1
      %p183 = scmp.ne.s32.totalorder %s178, %s180
      %p184 = scmp.eq.s32.totalorder %s29, 0
      %p185 = por %p183, %p184
      %p186 = scmp.ne.s32.totalorder %s178, %s180
      %p187 = scmp.eq.s32.totalorder %s34, 1
      %p188 = por %p186, %p187
      %p189 = scmp.ne.s32.totalorder %s180, %s181
      %p190 = scmp.eq.s32.totalorder %s34, 0
      %p191 = por %p189, %p190
      %p192 = scmp.ne.s32.totalorder %s180, %s181
      %p193 = scmp.eq.s32.totalorder %s35, 1
      %p194 = por %p192, %p193
      %p196 = scmp.ne.s32.totalorder %s181, %s195
      %p197 = scmp.eq.s32.totalorder %s35, 0
      %p198 = por %p196, %p197
      %s200 = sadd.s32 %s199, 1
      %p203 = scmp.eq.s32.totalorder %s29, 1
      %p204 = scmp.ne.s32.totalorder %s199, %s201
      %p205 = scmp.eq.s32.totalorder %s29, 0
      %p206 = por %p204, %p205
      %p207 = scmp.ne.s32.totalorder %s199, %s201
      %p208 = scmp.eq.s32.totalorder %s34, 1
      %p209 = por %p207, %p208
      %p210 = scmp.ne.s32.totalorder %s201, %s202
      %p211 = scmp.eq.s32.totalorder %s34, 0
      %p212 = por %p210, %p211
      %p213 = scmp.ne.s32.totalorder %s201, %s202
      %p214 = scmp.eq.s32.totalorder %s35, 1
      %p215 = por %p213, %p214
      %p217 = scmp.ne.s32.totalorder %s202, %s216
      %p218 = scmp.eq.s32.totalorder %s35, 0
      %p219 = por %p217, %p218
      %s221 = sadd.s32 %s220, 1
      %p224 = scmp.eq.s32.totalorder %s29, 1
      %p225 = scmp.ne.s32.totalorder %s220, %s222
      %p226 = scmp.eq.s32.totalorder %s29, 0
      %p227 = por %p225, %p226
      %p228 = scmp.ne.s32.totalorder %s220, %s222
      %p229 = scmp.eq.s32.totalorder %s34, 1
      %p230 = por %p228, %p229
      %p231 = scmp.ne.s32.totalorder %s222, %s223
      %p232 = scmp.eq.s32.totalorder %s34, 0
      %p233 = por %p231, %p232
      %p234 = scmp.ne.s32.totalorder %s222, %s223
      %p235 = scmp.eq.s32.totalorder %s35, 1
      %p236 = por %p234, %p235
      %p238 = scmp.ne.s32.totalorder %s223, %s237
      %p239 = scmp.eq.s32.totalorder %s35, 0
      %p240 = por %p238, %p239
      %s242 = sadd.s32 %s241, 1
      %p245 = scmp.eq.s32.totalorder %s29, 1
      %p246 = scmp.ne.s32.totalorder %s241, %s243
      %p247 = scmp.eq.s32.totalorder %s29, 0
      %p248 = por %p246, %p247
      %p249 = scmp.ne.s32.totalorder %s241, %s243
      %p250 = scmp.eq.s32.totalorder %s34, 1
      %p251 = por %p249, %p250
      %p252 = scmp.ne.s32.totalorder %s243, %s244
      %p253 = scmp.eq.s32.totalorder %s34, 0
      %p254 = por %p252, %p253
      %p255 = scmp.ne.s32.totalorder %s243, %s244
      %p256 = scmp.eq.s32.totalorder %s35, 1
      %p257 = por %p255, %p256
      %p259 = scmp.ne.s32.totalorder %s244, %s258
      %p260 = scmp.eq.s32.totalorder %s35, 0
      %p261 = por %p259, %p260
      %s262 = ssub.s32 %s29, %s36
      %p263 = scmp.eq.s32.totalorder %s262, 0
      %s265 = sadd.s32 %s264, 1
      %s266 = scalar_select %p263, %s264, %s265
      %p269 = pneg %p263
      %p270 = scmp.eq.s32.totalorder %s29, 1
      %p271 = por %p269, %p270
      %p272 = scmp.ne.s32.totalorder %s264, %s267
      %p273 = scmp.eq.s32.totalorder %s29, 0
      %p274 = por %p272, %p273
      %p275 = scmp.ne.s32.totalorder %s264, %s267
      %p276 = scmp.eq.s32.totalorder %s34, 1
      %p277 = por %p275, %p276
      %p278 = scmp.ne.s32.totalorder %s267, %s268
      %p279 = scmp.eq.s32.totalorder %s34, 0
      %p280 = por %p278, %p279
      %p281 = scmp.ne.s32.totalorder %s267, %s268
      %p282 = scmp.eq.s32.totalorder %s35, 1
      %p283 = por %p281, %p282
      %p285 = scmp.ne.s32.totalorder %s268, %s284
      %p286 = scmp.eq.s32.totalorder %s35, 0
      %p287 = por %p285, %p286
      %s288 = ssub.s32 %s29, %s36
      %p289 = scmp.eq.s32.totalorder %s288, 0
      %s291 = sadd.s32 %s290, 1
      %s292 = scalar_select %p289, %s290, %s291
      %p295 = pneg %p289
      %p296 = scmp.eq.s32.totalorder %s29, 1
      %p297 = por %p295, %p296
      %p298 = scmp.ne.s32.totalorder %s290, %s293
      %p299 = scmp.eq.s32.totalorder %s29, 0
      %p300 = por %p298, %p299
      %p301 = scmp.ne.s32.totalorder %s290, %s293
      %p302 = scmp.eq.s32.totalorder %s34, 1
      %p303 = por %p301, %p302
      %p304 = scmp.ne.s32.totalorder %s293, %s294
      %p305 = scmp.eq.s32.totalorder %s34, 0
      %p306 = por %p304, %p305
      %p307 = scmp.ne.s32.totalorder %s293, %s294
      %p308 = scmp.eq.s32.totalorder %s35, 1
      %p309 = por %p307, %p308
      %p311 = scmp.ne.s32.totalorder %s294, %s310
      %p312 = scmp.eq.s32.totalorder %s35, 0
      %p313 = por %p311, %p312
      %p314 = scmp.le.s32.totalorder 1, %s29
      %p315 = scmp.lt.s32.totalorder %s29, 3
      %p316 = pnand %p314, %p315
      %p317 = pneg %p316
      // Predicated region
      $region9: #{tpu_custom_call.1} parent=5 // pred_check
        _
      $region10: #{tpu_custom_call.1} parent=5 // pred_check_branch
        %319 = sbr.rel (%p316) target = $region12
      $region11: #{tpu_custom_call.1} parent=5 // pred_region
        %s320 = ssub.s32 %s29, 1
        // Predicated region
        $region13: #{tpu_custom_call.1} parent=11 // pred_check
          %p321 = pneg %p128
        $region14: #{tpu_custom_call.1} parent=11 // pred_check_branch
          %323 = sbr.rel (%p321) target = $region16
        $region15: #{tpu_custom_call.1} parent=11 // pred_region
          _
        $region16: #{tpu_custom_call.1} parent=11 // pred_fallthru
          _
        // Predicated region
        $region17: #{tpu_custom_call.1} parent=11 // pred_check
          %p324 = pneg %p149
        $region18: #{tpu_custom_call.1} parent=11 // pred_check_branch
          %326 = sbr.rel (%p324) target = $region20
        $region19: #{tpu_custom_call.1} parent=11 // pred_region
          %s328 = ssub.s32 16, 16
          %329 = vsyncadd [#allocation6], %s328
          %s331 = sshll.u32 [#allocation5], 4
          %s332 = int_to_ptr.vmem [resolvable:$true] %s331
          %334 = dma.hbm_to_vmem [thread:$0]  %s4, 16, %s332, [#allocation6]
        $region20: #{tpu_custom_call.1} parent=11 // pred_fallthru
          _
        // Predicated region
        $region21: #{tpu_custom_call.1} parent=11 // pred_check
          %p335 = pneg %p170
        $region22: #{tpu_custom_call.1} parent=11 // pred_check_branch
          %337 = sbr.rel (%p335) target = $region24
        $region23: #{tpu_custom_call.1} parent=11 // pred_region
          _
        $region24: #{tpu_custom_call.1} parent=11 // pred_fallthru
          _
        // Predicated region
        $region25: #{tpu_custom_call.1} parent=11 // pred_check
          %p338 = pneg %p191
        $region26: #{tpu_custom_call.1} parent=11 // pred_check_branch
          %340 = sbr.rel (%p338) target = $region28
        $region27: #{tpu_custom_call.1} parent=11 // pred_region
          _
        $region28: #{tpu_custom_call.1} parent=11 // pred_fallthru
          _
        // Predicated region
        $region29: #{tpu_custom_call.1} parent=11 // pred_check
          %p341 = pneg %p212
        $region30: #{tpu_custom_call.1} parent=11 // pred_check_branch
          %343 = sbr.rel (%p341) target = $region32
        $region31: #{tpu_custom_call.1} parent=11 // pred_region
          %s345 = ssub.s32 16, 16
          %346 = vsyncadd [#allocation6], %s345
          %s348 = sshll.u32 [#allocation7], 4
          %s349 = int_to_ptr.vmem [resolvable:$true] %s348
          %351 = dma.hbm_to_vmem [thread:$0]  %s7, 16, %s349, [#allocation6]
        $region32: #{tpu_custom_call.1} parent=11 // pred_fallthru
          _
        // Predicated region
        $region33: #{tpu_custom_call.1} parent=11 // pred_check
          %p352 = pneg %p233
        $region34: #{tpu_custom_call.1} parent=11 // pred_check_branch
          %354 = sbr.rel (%p352) target = $region36
        $region35: #{tpu_custom_call.1} parent=11 // pred_region
          _
        $region36: #{tpu_custom_call.1} parent=11 // pred_fallthru
          _
        // Predicated region
        $region37: #{tpu_custom_call.1} parent=11 // pred_check
          %p355 = pneg %p254
        $region38: #{tpu_custom_call.1} parent=11 // pred_check_branch
          %357 = sbr.rel (%p355) target = $region40
        $region39: #{tpu_custom_call.1} parent=11 // pred_region
          %s359 = ssub.s32 96, 96
          %360 = vsyncadd [#allocation9], %s359
          %s361 = sshll.u32 [#allocation8], 4
          %s362 = int_to_ptr.vmem [resolvable:$true] %s361
          %367 = dma.hbm_to_vmem [thread:$0]  %s9, 96, %s362, [#allocation9], 16, 16, 1
        $region40: #{tpu_custom_call.1} parent=11 // pred_fallthru
          _
      $region12: #{tpu_custom_call.1} parent=5 // pred_fallthru
        _
      %p368 = scmp.lt.s32.totalorder %s29, 2
      // Predicated region
      $region41: #{tpu_custom_call.1} parent=5 // pred_check
        %p369 = pneg %p368
      $region42: #{tpu_custom_call.1} parent=5 // pred_check_branch
        %371 = sbr.rel (%p369) target = $region44
      $region43: #{tpu_custom_call.1} parent=5 // pred_region
        // Predicated region
        $region45: #{tpu_custom_call.1} parent=43 // pred_check
          %p372 = pneg %p49
        $region46: #{tpu_custom_call.1} parent=43 // pred_check_branch
          %374 = sbr.rel (%p372) target = $region48
        $region47: #{tpu_custom_call.1} parent=43 // pred_region
          %p375 = scmp.lt.s32.totalorder %s29, 1
          %s376 = scalar_select %p375, %s29, 1
          %s377 = smul.addr %s376, 8
          %s378 = scalar_lea.vmem %s0, %s377
        $region48: #{tpu_custom_call.1} parent=43 // pred_fallthru
          _
        // Predicated region
        $region49: #{tpu_custom_call.1} parent=43 // pred_check
          %p379 = pneg %p75
        $region50: #{tpu_custom_call.1} parent=43 // pred_check_branch
          %381 = sbr.rel (%p379) target = $region52
        $region51: #{tpu_custom_call.1} parent=43 // pred_region
          %p382 = scmp.lt.s32.totalorder %s29, 1
          %s383 = scalar_select %p382, %s29, 1
          %s384 = smul.addr %s383, 8
          %s385 = scalar_lea.vmem %s1, %s384
        $region52: #{tpu_custom_call.1} parent=43 // pred_fallthru
          _
        // Predicated region
        $region53: #{tpu_custom_call.1} parent=43 // pred_check
          %p386 = pneg %p101
        $region54: #{tpu_custom_call.1} parent=43 // pred_check_branch
          %388 = sbr.rel (%p386) target = $region56
        $region55: #{tpu_custom_call.1} parent=43 // pred_region
          %s389 = sand.u32 %s91, 1
          %s390 = scalar_lea.sflag [#allocation3], %s389
          %s391 = sand.u32 %s91, 1
          %s392 = scalar_lea.vmem [#allocation2], %s391
          %s394 = ssub.s32 16, 16
          %395 = vsyncadd %s390, %s394
          %s396 = smul.addr %s29, 16
          %s397 = scalar_lea.hbm %s2, %s396
          %s399 = sshll.u32 %s392, 4
          %s400 = int_to_ptr.vmem [resolvable:$true] %s399
          %402 = dma.hbm_to_vmem [thread:$0]  %s397, 16, %s400, %s390
        $region56: #{tpu_custom_call.1} parent=43 // pred_fallthru
          _
      $region44: #{tpu_custom_call.1} parent=5 // pred_fallthru
        _
      %p403 = scmp.le.s32.totalorder 1, %s29
      %p404 = scmp.lt.s32.totalorder %s29, 3
      %p405 = pnand %p403, %p404
      %p406 = pneg %p405
      // Predicated region
      $region57: #{tpu_custom_call.1} parent=5 // pred_check
        _
      $region58: #{tpu_custom_call.1} parent=5 // pred_check_branch
        %408 = sbr.rel (%p405) target = $region60
      $region59: #{tpu_custom_call.1} parent=5 // pred_region
        %s409 = ssub.s32 %s29, 1
        %s410 = sand.u32 %s94, 1
        %s411 = scalar_lea.sflag [#allocation3], %s410
        %s412 = sand.u32 %s94, 1
        %s413 = scalar_lea.vmem [#allocation2], %s412
        // Predicated region
        $region61: #{tpu_custom_call.1} parent=59 // pred_check
          %p414 = pneg %p107
        $region62: #{tpu_custom_call.1} parent=59 // pred_check_branch
          %416 = sbr.rel (%p414) target = $region64
        $region63: #{tpu_custom_call.1} parent=59 // pred_region
          %417 = dma.done %s411, 16
        $region64: #{tpu_custom_call.1} parent=59 // pred_fallthru
          _
        // Predicated region
        $region65: #{tpu_custom_call.1} parent=59 // pred_check
          %p418 = pneg %p149
        $region66: #{tpu_custom_call.1} parent=59 // pred_check_branch
          %420 = sbr.rel (%p418) target = $region68
        $region67: #{tpu_custom_call.1} parent=59 // pred_region
          %421 = dma.done [#allocation6], 16
        $region68: #{tpu_custom_call.1} parent=59 // pred_fallthru
          _
        // Predicated region
        $region69: #{tpu_custom_call.1} parent=59 // pred_check
          %p422 = pneg %p212
        $region70: #{tpu_custom_call.1} parent=59 // pred_check_branch
          %424 = sbr.rel (%p422) target = $region72
        $region71: #{tpu_custom_call.1} parent=59 // pred_region
          %425 = dma.done [#allocation6], 16
        $region72: #{tpu_custom_call.1} parent=59 // pred_fallthru
          _
        // Predicated region
        $region73: #{tpu_custom_call.1} parent=59 // pred_check
          %p426 = pneg %p254
        $region74: #{tpu_custom_call.1} parent=59 // pred_check_branch
          %428 = sbr.rel (%p426) target = $region76
        $region75: #{tpu_custom_call.1} parent=59 // pred_region
          %429 = dma.done [#allocation9], 96
        $region76: #{tpu_custom_call.1} parent=59 // pred_fallthru
          _
        %p430 = scmp.lt.s32.totalorder %s34, 1
        %s431 = scalar_select %p430, %s34, 1
        %s432 = smul.addr %s431, 8
        %s433 = scalar_lea.vmem %s0, %s432
        %p434 = pneg %p55
        %p435 = pneg %p52
        %p436 = scmp.lt.s32.totalorder %s34, 1
        %s437 = scalar_select %p436, %s34, 1
        %s438 = smul.addr %s437, 8
        %s439 = scalar_lea.vmem %s1, %s438
        %p440 = pneg %p81
        %p441 = pneg %p78
        %s442 = sand.u32 %s94, 1
        %s443 = scalar_lea.sflag [#allocation3], %s442
        %s444 = sand.u32 %s94, 1
        %s445 = scalar_lea.vmem [#allocation2], %s444
        %p446 = pneg %p107
        %p447 = pneg %p104
        %p448 = pneg %p128
        %p449 = pneg %p125
        %p450 = pneg %p149
        %p451 = pneg %p146
        %p452 = pneg %p170
        %p453 = pneg %p167
        %p454 = pneg %p191
        %p455 = pneg %p188
        %p456 = pneg %p212
        %p457 = pneg %p209
        %p458 = pneg %p233
        %p459 = pneg %p230
        %p460 = pneg %p254
        %p461 = pneg %p251
        %p462 = pneg %p280
        %p463 = pneg %p277
        %s464 = sand.u32 %s267, 1
        %s465 = scalar_lea.sflag [#allocation4], %s464
        %s466 = sand.u32 %s267, 1
        %s467 = smul.addr %s466, 8
        %s468 = scalar_lea.vmem [#allocation10], %s467
        %p469 = pneg %p306
        %p470 = pneg %p303
        %s471 = sand.u32 %s293, 1
        %s472 = scalar_lea.sflag [#allocation12], %s471
        %s473 = sand.u32 %s293, 1
        %s474 = smul.addr %s473, 32
        %s475 = scalar_lea.vmem [#allocation11], %s474
        %p476 = scmp.lt.s32.totalorder %s34, 1
        %s477 = scalar_select %p476, %s34, 1
        %s478 = smul.addr %s477, 8
        %s479 = scalar_lea.vmem %s0, %s478
        %p480 = scmp.lt.s32.totalorder %s34, 1
        %s481 = scalar_select %p480, %s34, 1
        %s482 = smul.addr %s481, 8
        %s483 = scalar_lea.vmem %s1, %s482
        %v485 = vld [vmem:[%s479] sm:$0xff]
        %v486 = vpack.c.bf16 %v485, %v485
        %v487 = vld [vmem:[%s483] sm:$0xff]
        %v488 = vld [vmem:[%s413] sm:$0x1]
        %v489 = vld [vmem:[#allocation8] sm:$0x1]
        %s490 = scalar_lea.vmem [#allocation8], 1
        %v491 = vld [vmem:[%s490] sm:$0x1]
        %s492 = scalar_lea.vmem [#allocation8], 2
        %v493 = vld [vmem:[%s492] sm:$0x1]
        %s494 = scalar_lea.vmem [#allocation8], 3
        %v495 = vld [vmem:[%s494] sm:$0x1]
        %s496 = scalar_lea.vmem [#allocation8], 4
        %v497 = vld [vmem:[%s496] sm:$0x1]
        %s498 = scalar_lea.vmem [#allocation8], 5
        %v499 = vld [vmem:[%s498] sm:$0x1]
        %v500 = vld [vmem:[%s3] sm:$0xf]
        %v501 = vld [vmem:[%s3 + $0x4] sm:$0xf]
        %v502 = vld [vmem:[%s3 + $0x8] sm:$0xf]
        %v503 = vld [vmem:[%s3 + $0xc] sm:$0xf]
        %v504 = vld [vmem:[#allocation5] sm:$0x1]
        %v506 = vlaneseq
        %v507 = vshrl.u32 %v506, 7
        %v508 = vsub.s32 0, %v507
        %v509 = vrot.slane %v504, %v508
        %v515 = vunpack.c.l.b16 %v500
        %v516 = vunpack.c.l.b16 %v501
        %v517 = vunpack.c.l.b16 %v502
        %v518 = vunpack.c.l.b16 %v503
        %v519 = vpack.c.b16 %v516, %v515
        %v520 = vpack.c.b16 %v518, %v517
        %vm523 = vcmask 261120
        %v525 = vsel %vm523, %v486, 0
        %527 = vmatprep.subr.bf16.mxu0 0
        %528 = vmatpush1.bf16.msra.mxu0 0
        %529 = vmatprep.subr.bf16.mxu0 0
        %530 = vmatpush1.bf16.msra.mxu0 0
        %531 = vmatprep.subr.bf16.mxu0 0
        %532 = vmatpush1.bf16.msra.mxu0 0
        %533 = vmatprep.subr.bf16.mxu0 0
        %534 = vmatpush1.bf16.msra.mxu0 0
        %535 = vmatprep.subr.bf16.mxu0 0
        %536 = vmatpush1.bf16.msra.mxu0 0
        %537 = vmatprep.subr.bf16.mxu0 0
        %538 = vmatpush1.bf16.msra.mxu0 0
        %539 = vmatprep.subr.bf16.mxu0 0
        %540 = vmatpush1.bf16.msra.mxu0 %v520
        %541 = vmatprep.subr.bf16.mxu0 0
        %542 = vmatpush1.bf16.msra.mxu0 %v519
        %543 = vmatprep.subr.bf16.mxu0 0
        %544 = vmatpush2.bf16.msra.mxu0 0
        %545 = vmatprep.subr.bf16.mxu0 0
        %546 = vmatpush2.bf16.msra.mxu0 0
        %547 = vmatprep.subr.bf16.mxu0 0
        %548 = vmatpush2.bf16.msra.mxu0 0
        %549 = vmatprep.subr.bf16.mxu0 0
        %550 = vmatpush2.bf16.msra.mxu0 0
        %551 = vmatprep.subr.bf16.mxu0 0
        %552 = vmatpush2.bf16.msra.mxu0 0
        %553 = vmatprep.subr.bf16.mxu0 0
        %554 = vmatpush2.bf16.msra.mxu0 0
        %555 = vmatprep.subr.bf16.mxu0 0
        %556 = vmatpush2.bf16.msra.mxu0 0
        %557 = vmatprep.subr.bf16.mxu0 0
        %558 = vmatpush2.bf16.msra.mxu0 0
        %559 = vmatprep.mubr.bf16.mxu0 0
        %560 = vmatmul.mubr.bf16.gmra.mxu0 %v525
        %v561 = vpop.f32.mrf.mxu0
        %v562 = vadd.f32 %v509, %v561
        %v563 = vpop.f32.mrf.mxu0
        %v564 = vpop.f32.mrf.mxu0
        %v565 = vpop.f32.mrf.mxu0
        %566 = vdwg.mxu0
        %v567 = vmul.f32 %v562, 0.35355338
        %v568 = vpack.c.bf16 %v567, %v567
        %v569 = vpack.c.bf16 %v562, %v562
        %571 = vrot.lane.b32.xlu0 %v569, 96
        %v572 = vpop.permute.xlu0 %571
        %vm573 = vcmask 64512
        %v575 = vsel %vm573, %v568, 0
        %v578 = vsel %vm573, %v572, 0
        %580 = vmatprep.subr.bf16.mxu0 0
        %581 = vmatpush1.bf16.xpose.msra.mxu0 0
        %582 = vmatprep.subr.bf16.mxu0 0
        %583 = vmatpush1.bf16.xpose.msra.mxu0 0
        %584 = vmatprep.subr.bf16.mxu0 0
        %585 = vmatpush1.bf16.xpose.msra.mxu0 0
        %586 = vmatprep.subr.bf16.mxu0 0
        %587 = vmatpush1.bf16.xpose.msra.mxu0 0
        %588 = vmatprep.subr.bf16.mxu0 0
        %589 = vmatpush1.bf16.xpose.msra.mxu0 0
        %590 = vmatprep.subr.bf16.mxu0 0
        %591 = vmatpush1.bf16.xpose.msra.mxu0 0
        %592 = vmatprep.subr.bf16.mxu0 0
        %593 = vmatpush1.bf16.xpose.msra.mxu0 0
        %594 = vmatprep.subr.bf16.mxu0 0
        %595 = vmatpush1.bf16.xpose.msra.mxu0 %v578
        %596 = vmatprep.subr.bf16.mxu0 0
        %597 = vmatpush2.bf16.xpose.msra.mxu0 0
        %598 = vmatprep.subr.bf16.mxu0 0
        %599 = vmatpush2.bf16.xpose.msra.mxu0 0
        %600 = vmatprep.subr.bf16.mxu0 0
        %601 = vmatpush2.bf16.xpose.msra.mxu0 0
        %602 = vmatprep.subr.bf16.mxu0 0
        %603 = vmatpush2.bf16.xpose.msra.mxu0 0
        %604 = vmatprep.subr.bf16.mxu0 0
        %605 = vmatpush2.bf16.xpose.msra.mxu0 0
        %606 = vmatprep.subr.bf16.mxu0 0
        %607 = vmatpush2.bf16.xpose.msra.mxu0 0
        %608 = vmatprep.subr.bf16.mxu0 0
        %609 = vmatpush2.bf16.xpose.msra.mxu0 0
        %610 = vmatprep.subr.bf16.mxu0 0
        %611 = vmatpush2.bf16.xpose.msra.mxu0 0
        %612 = vmatprep.mubr.bf16.mxu0 0
        %613 = vmatmul.mubr.bf16.gmra.mxu0 %v575
        %v614 = vpop.f32.mrf.mxu0
        %v615 = vadd.f32 0.0, %v614
        %v616 = vpop.f32.mrf.mxu0
        %v617 = vpop.f32.mrf.mxu0
        %v618 = vpop.f32.mrf.mxu0
        %619 = vdwg.mxu0
        %vm620 = vcmp.gt.f32.partialorder %v488, 0.0
        %v621 = vsel %vm620, 1, 0
        %v622 = vlaneseq
        %v623 = vshrl.u32 %v622, 7
        %v624 = vsub.s32 0, %v623
        %v625 = vrot.slane %v621, %v624
        %vm626 = vcmp.eq.s32.totalorder %v625, 1
        %v627 = vsel %vm626, -inf, %v615
        %v628 = vsel %vm573, %v627, -inf
        %629 = vmax.xlane.f32.xlu0 %v628
        %v630 = vpop.xlane.xlu0 %629
        %v631 = vsub.f32 %v627, %v630
        %v632 = vmul.f32 %v631, 1.442695
        %v633 = vpow.pop %v632
        %v634 = vsel %vm573, %v633, 0.0
        %635 = vadd.xlane.f32.xlu0 %v634
        %v636 = vpop.xlane.xlu0 %635
        %v637 = vrcp.pop %v636
        %v638 = vmul.f32 %v633, %v637
        %639 = vst.msk [vmem:[%s475] sm:$0xff] %vm573, %v638
        %v640 = vpack.c.bf16 %v638, %v638
        %641 = vrot.lane.b32.xlu0 %v569, 64
        %v642 = vpop.permute.xlu0 %641
        %v644 = vsel %vm573, %v640, 0
        %vm646 = vcmask 1043456
        %v648 = vsel %vm646, %v642, 0
        %650 = vmatprep.subr.bf16.mxu0 0
        %651 = vmatpush1.bf16.msra.mxu0 0
        %652 = vmatprep.subr.bf16.mxu0 0
        %653 = vmatpush1.bf16.msra.mxu0 0
        %654 = vmatprep.subr.bf16.mxu0 0
        %655 = vmatpush1.bf16.msra.mxu0 0
        %656 = vmatprep.subr.bf16.mxu0 0
        %657 = vmatpush1.bf16.msra.mxu0 0
        %658 = vmatprep.subr.bf16.mxu0 0
        %659 = vmatpush1.bf16.msra.mxu0 0
        %660 = vmatprep.subr.bf16.mxu0 0
        %661 = vmatpush1.bf16.msra.mxu0 0
        %662 = vmatprep.subr.bf16.mxu0 0
        %663 = vmatpush1.bf16.msra.mxu0 0
        %664 = vmatprep.subr.bf16.mxu0 0
        %665 = vmatpush1.bf16.msra.mxu0 %v648
        %666 = vmatprep.subr.bf16.mxu0 0
        %667 = vmatpush2.bf16.msra.mxu0 0
        %668 = vmatprep.subr.bf16.mxu0 0
        %669 = vmatpush2.bf16.msra.mxu0 0
        %670 = vmatprep.subr.bf16.mxu0 0
        %671 = vmatpush2.bf16.msra.mxu0 0
        %672 = vmatprep.subr.bf16.mxu0 0
        %673 = vmatpush2.bf16.msra.mxu0 0
        %674 = vmatprep.subr.bf16.mxu0 0
        %675 = vmatpush2.bf16.msra.mxu0 0
        %676 = vmatprep.subr.bf16.mxu0 0
        %677 = vmatpush2.bf16.msra.mxu0 0
        %678 = vmatprep.subr.bf16.mxu0 0
        %679 = vmatpush2.bf16.msra.mxu0 0
        %680 = vmatprep.subr.bf16.mxu0 0
        %681 = vmatpush2.bf16.msra.mxu0 0
        %682 = vmatprep.mubr.bf16.mxu0 0
        %683 = vmatmul.mubr.bf16.gmra.mxu0 %v644
        %v684 = vpop.f32.mrf.mxu0
        %v685 = vadd.f32 0.0, %v684
        %v686 = vpop.f32.mrf.mxu0
        %v687 = vpop.f32.mrf.mxu0
        %v688 = vpop.f32.mrf.mxu0
        %689 = vdwg.mxu0
        %691 = vrot.lane.b32.xlu0 %v568, 120
        %v692 = vpop.permute.xlu0 %691
        %693 = vrot.lane.b32.xlu0 %v569, 88
        %v694 = vpop.permute.xlu0 %693
        %v696 = vsel %vm573, %v692, 0
        %v699 = vsel %vm573, %v694, 0
        %701 = vmatprep.subr.bf16.mxu0 0
        %702 = vmatpush1.bf16.xpose.msra.mxu0 0
        %703 = vmatprep.subr.bf16.mxu0 0
        %704 = vmatpush1.bf16.xpose.msra.mxu0 0
        %705 = vmatprep.subr.bf16.mxu0 0
        %706 = vmatpush1.bf16.xpose.msra.mxu0 0
        %707 = vmatprep.subr.bf16.mxu0 0
        %708 = vmatpush1.bf16.xpose.msra.mxu0 0
        %709 = vmatprep.subr.bf16.mxu0 0
        %710 = vmatpush1.bf16.xpose.msra.mxu0 0
        %711 = vmatprep.subr.bf16.mxu0 0
        %712 = vmatpush1.bf16.xpose.msra.mxu0 0
        %713 = vmatprep.subr.bf16.mxu0 0
        %714 = vmatpush1.bf16.xpose.msra.mxu0 0
        %715 = vmatprep.subr.bf16.mxu0 0
        %716 = vmatpush1.bf16.xpose.msra.mxu0 %v699
        %717 = vmatprep.subr.bf16.mxu0 0
        %718 = vmatpush2.bf16.xpose.msra.mxu0 0
        %719 = vmatprep.subr.bf16.mxu0 0
        %720 = vmatpush2.bf16.xpose.msra.mxu0 0
        %721 = vmatprep.subr.bf16.mxu0 0
        %722 = vmatpush2.bf16.xpose.msra.mxu0 0
        %723 = vmatprep.subr.bf16.mxu0 0
        %724 = vmatpush2.bf16.xpose.msra.mxu0 0
        %725 = vmatprep.subr.bf16.mxu0 0
        %726 = vmatpush2.bf16.xpose.msra.mxu0 0
        %727 = vmatprep.subr.bf16.mxu0 0
        %728 = vmatpush2.bf16.xpose.msra.mxu0 0
        %729 = vmatprep.subr.bf16.mxu0 0
        %730 = vmatpush2.bf16.xpose.msra.mxu0 0
        %731 = vmatprep.subr.bf16.mxu0 0
        %732 = vmatpush2.bf16.xpose.msra.mxu0 0
        %733 = vmatprep.mubr.bf16.mxu0 0
        %734 = vmatmul.mubr.bf16.gmra.mxu0 %v696
        %v735 = vpop.f32.mrf.mxu0
        %v736 = vadd.f32 0.0, %v735
        %v737 = vpop.f32.mrf.mxu0
        %v738 = vpop.f32.mrf.mxu0
        %v739 = vpop.f32.mrf.mxu0
        %740 = vdwg.mxu0
        %v741 = vsel %vm626, -inf, %v736
        %v742 = vsel %vm573, %v741, -inf
        %743 = vmax.xlane.f32.xlu0 %v742
        %v744 = vpop.xlane.xlu0 %743
        %v745 = vsub.f32 %v741, %v744
        %v746 = vmul.f32 %v745, 1.442695
        %v747 = vpow.pop %v746
        %v748 = vsel %vm573, %v747, 0.0
        %749 = vadd.xlane.f32.xlu0 %v748
        %v750 = vpop.xlane.xlu0 %749
        %v751 = vrcp.pop %v750
        %v752 = vmul.f32 %v747, %v751
        %s753 = scalar_lea.vmem %s475, 8 [#allocation11]
        %754 = vst.msk [vmem:[%s753] sm:$0xff] %vm573, %v752
        %v755 = vpack.c.bf16 %v752, %v752
        %756 = vrot.lane.b32.xlu0 %v569, 56
        %v757 = vpop.permute.xlu0 %756
        %v759 = vsel %vm573, %v755, 0
        %v762 = vsel %vm646, %v757, 0
        %764 = vmatprep.subr.bf16.mxu0 0
        %765 = vmatpush1.bf16.msra.mxu0 0
        %766 = vmatprep.subr.bf16.mxu0 0
        %767 = vmatpush1.bf16.msra.mxu0 0
        %768 = vmatprep.subr.bf16.mxu0 0
        %769 = vmatpush1.bf16.msra.mxu0 0
        %770 = vmatprep.subr.bf16.mxu0 0
        %771 = vmatpush1.bf16.msra.mxu0 0
        %772 = vmatprep.subr.bf16.mxu0 0
        %773 = vmatpush1.bf16.msra.mxu0 0
        %774 = vmatprep.subr.bf16.mxu0 0
        %775 = vmatpush1.bf16.msra.mxu0 0
        %776 = vmatprep.subr.bf16.mxu0 0
        %777 = vmatpush1.bf16.msra.mxu0 0
        %778 = vmatprep.subr.bf16.mxu0 0
        %779 = vmatpush1.bf16.msra.mxu0 %v762
        %780 = vmatprep.subr.bf16.mxu0 0
        %781 = vmatpush2.bf16.msra.mxu0 0
        %782 = vmatprep.subr.bf16.mxu0 0
        %783 = vmatpush2.bf16.msra.mxu0 0
        %784 = vmatprep.subr.bf16.mxu0 0
        %785 = vmatpush2.bf16.msra.mxu0 0
        %786 = vmatprep.subr.bf16.mxu0 0
        %787 = vmatpush2.bf16.msra.mxu0 0
        %788 = vmatprep.subr.bf16.mxu0 0
        %789 = vmatpush2.bf16.msra.mxu0 0
        %790 = vmatprep.subr.bf16.mxu0 0
        %791 = vmatpush2.bf16.msra.mxu0 0
        %792 = vmatprep.subr.bf16.mxu0 0
        %793 = vmatpush2.bf16.msra.mxu0 0
        %794 = vmatprep.subr.bf16.mxu0 0
        %795 = vmatpush2.bf16.msra.mxu0 0
        %796 = vmatprep.mubr.bf16.mxu0 0
        %797 = vmatmul.mubr.bf16.gmra.mxu0 %v759
        %v798 = vpop.f32.mrf.mxu0
        %v799 = vadd.f32 0.0, %v798
        %v800 = vpop.f32.mrf.mxu0
        %v801 = vpop.f32.mrf.mxu0
        %v802 = vpop.f32.mrf.mxu0
        %803 = vdwg.mxu0
        %804 = vrot.lane.b32.xlu0 %v568, 112
        %v805 = vpop.permute.xlu0 %804
        %806 = vrot.lane.b32.xlu0 %v569, 80
        %v807 = vpop.permute.xlu0 %806
        %v809 = vsel %vm573, %v805, 0
        %v812 = vsel %vm573, %v807, 0
        %814 = vmatprep.subr.bf16.mxu0 0
        %815 = vmatpush1.bf16.xpose.msra.mxu0 0
        %816 = vmatprep.subr.bf16.mxu0 0
        %817 = vmatpush1.bf16.xpose.msra.mxu0 0
        %818 = vmatprep.subr.bf16.mxu0 0
        %819 = vmatpush1.bf16.xpose.msra.mxu0 0
        %820 = vmatprep.subr.bf16.mxu0 0
        %821 = vmatpush1.bf16.xpose.msra.mxu0 0
        %822 = vmatprep.subr.bf16.mxu0 0
        %823 = vmatpush1.bf16.xpose.msra.mxu0 0
        %824 = vmatprep.subr.bf16.mxu0 0
        %825 = vmatpush1.bf16.xpose.msra.mxu0 0
        %826 = vmatprep.subr.bf16.mxu0 0
        %827 = vmatpush1.bf16.xpose.msra.mxu0 0
        %828 = vmatprep.subr.bf16.mxu0 0
        %829 = vmatpush1.bf16.xpose.msra.mxu0 %v812
        %830 = vmatprep.subr.bf16.mxu0 0
        %831 = vmatpush2.bf16.xpose.msra.mxu0 0
        %832 = vmatprep.subr.bf16.mxu0 0
        %833 = vmatpush2.bf16.xpose.msra.mxu0 0
        %834 = vmatprep.subr.bf16.mxu0 0
        %835 = vmatpush2.bf16.xpose.msra.mxu0 0
        %836 = vmatprep.subr.bf16.mxu0 0
        %837 = vmatpush2.bf16.xpose.msra.mxu0 0
        %838 = vmatprep.subr.bf16.mxu0 0
        %839 = vmatpush2.bf16.xpose.msra.mxu0 0
        %840 = vmatprep.subr.bf16.mxu0 0
        %841 = vmatpush2.bf16.xpose.msra.mxu0 0
        %842 = vmatprep.subr.bf16.mxu0 0
        %843 = vmatpush2.bf16.xpose.msra.mxu0 0
        %844 = vmatprep.subr.bf16.mxu0 0
        %845 = vmatpush2.bf16.xpose.msra.mxu0 0
        %846 = vmatprep.mubr.bf16.mxu0 0
        %847 = vmatmul.mubr.bf16.gmra.mxu0 %v809
        %v848 = vpop.f32.mrf.mxu0
        %v849 = vadd.f32 0.0, %v848
        %v850 = vpop.f32.mrf.mxu0
        %v851 = vpop.f32.mrf.mxu0
        %v852 = vpop.f32.mrf.mxu0
        %853 = vdwg.mxu0
        %v854 = vsel %vm626, -inf, %v849
        %v855 = vsel %vm573, %v854, -inf
        %856 = vmax.xlane.f32.xlu0 %v855
        %v857 = vpop.xlane.xlu0 %856
        %v858 = vsub.f32 %v854, %v857
        %v859 = vmul.f32 %v858, 1.442695
        %v860 = vpow.pop %v859
        %v861 = vsel %vm573, %v860, 0.0
        %862 = vadd.xlane.f32.xlu0 %v861
        %v863 = vpop.xlane.xlu0 %862
        %v864 = vrcp.pop %v863
        %v865 = vmul.f32 %v860, %v864
        %s866 = scalar_lea.vmem %s475, 16 [#allocation11]
        %867 = vst.msk [vmem:[%s866] sm:$0xff] %vm573, %v865
        %v868 = vpack.c.bf16 %v865, %v865
        %869 = vrot.lane.b32.xlu0 %v569, 48
        %v870 = vpop.permute.xlu0 %869
        %v872 = vsel %vm573, %v868, 0
        %v875 = vsel %vm646, %v870, 0
        %877 = vmatprep.subr.bf16.mxu0 0
        %878 = vmatpush1.bf16.msra.mxu0 0
        %879 = vmatprep.subr.bf16.mxu0 0
        %880 = vmatpush1.bf16.msra.mxu0 0
        %881 = vmatprep.subr.bf16.mxu0 0
        %882 = vmatpush1.bf16.msra.mxu0 0
        %883 = vmatprep.subr.bf16.mxu0 0
        %884 = vmatpush1.bf16.msra.mxu0 0
        %885 = vmatprep.subr.bf16.mxu0 0
        %886 = vmatpush1.bf16.msra.mxu0 0
        %887 = vmatprep.subr.bf16.mxu0 0
        %888 = vmatpush1.bf16.msra.mxu0 0
        %889 = vmatprep.subr.bf16.mxu0 0
        %890 = vmatpush1.bf16.msra.mxu0 0
        %891 = vmatprep.subr.bf16.mxu0 0
        %892 = vmatpush1.bf16.msra.mxu0 %v875
        %893 = vmatprep.subr.bf16.mxu0 0
        %894 = vmatpush2.bf16.msra.mxu0 0
        %895 = vmatprep.subr.bf16.mxu0 0
        %896 = vmatpush2.bf16.msra.mxu0 0
        %897 = vmatprep.subr.bf16.mxu0 0
        %898 = vmatpush2.bf16.msra.mxu0 0
        %899 = vmatprep.subr.bf16.mxu0 0
        %900 = vmatpush2.bf16.msra.mxu0 0
        %901 = vmatprep.subr.bf16.mxu0 0
        %902 = vmatpush2.bf16.msra.mxu0 0
        %903 = vmatprep.subr.bf16.mxu0 0
        %904 = vmatpush2.bf16.msra.mxu0 0
        %905 = vmatprep.subr.bf16.mxu0 0
        %906 = vmatpush2.bf16.msra.mxu0 0
        %907 = vmatprep.subr.bf16.mxu0 0
        %908 = vmatpush2.bf16.msra.mxu0 0
        %909 = vmatprep.mubr.bf16.mxu0 0
        %910 = vmatmul.mubr.bf16.gmra.mxu0 %v872
        %v911 = vpop.f32.mrf.mxu0
        %v912 = vadd.f32 0.0, %v911
        %v913 = vpop.f32.mrf.mxu0
        %v914 = vpop.f32.mrf.mxu0
        %v915 = vpop.f32.mrf.mxu0
        %916 = vdwg.mxu0
        %917 = vrot.lane.b32.xlu0 %v568, 104
        %v918 = vpop.permute.xlu0 %917
        %919 = vrot.lane.b32.xlu0 %v569, 72
        %v920 = vpop.permute.xlu0 %919
        %v922 = vsel %vm573, %v918, 0
        %v925 = vsel %vm573, %v920, 0
        %927 = vmatprep.subr.bf16.mxu0 0
        %928 = vmatpush1.bf16.xpose.msra.mxu0 0
        %929 = vmatprep.subr.bf16.mxu0 0
        %930 = vmatpush1.bf16.xpose.msra.mxu0 0
        %931 = vmatprep.subr.bf16.mxu0 0
        %932 = vmatpush1.bf16.xpose.msra.mxu0 0
        %933 = vmatprep.subr.bf16.mxu0 0
        %934 = vmatpush1.bf16.xpose.msra.mxu0 0
        %935 = vmatprep.subr.bf16.mxu0 0
        %936 = vmatpush1.bf16.xpose.msra.mxu0 0
        %937 = vmatprep.subr.bf16.mxu0 0
        %938 = vmatpush1.bf16.xpose.msra.mxu0 0
        %939 = vmatprep.subr.bf16.mxu0 0
        %940 = vmatpush1.bf16.xpose.msra.mxu0 0
        %941 = vmatprep.subr.bf16.mxu0 0
        %942 = vmatpush1.bf16.xpose.msra.mxu0 %v925
        %943 = vmatprep.subr.bf16.mxu0 0
        %944 = vmatpush2.bf16.xpose.msra.mxu0 0
        %945 = vmatprep.subr.bf16.mxu0 0
        %946 = vmatpush2.bf16.xpose.msra.mxu0 0
        %947 = vmatprep.subr.bf16.mxu0 0
        %948 = vmatpush2.bf16.xpose.msra.mxu0 0
        %949 = vmatprep.subr.bf16.mxu0 0
        %950 = vmatpush2.bf16.xpose.msra.mxu0 0
        %951 = vmatprep.subr.bf16.mxu0 0
        %952 = vmatpush2.bf16.xpose.msra.mxu0 0
        %953 = vmatprep.subr.bf16.mxu0 0
        %954 = vmatpush2.bf16.xpose.msra.mxu0 0
        %955 = vmatprep.subr.bf16.mxu0 0
        %956 = vmatpush2.bf16.xpose.msra.mxu0 0
        %957 = vmatprep.subr.bf16.mxu0 0
        %958 = vmatpush2.bf16.xpose.msra.mxu0 0
        %959 = vmatprep.mubr.bf16.mxu0 0
        %960 = vmatmul.mubr.bf16.gmra.mxu0 %v922
        %v961 = vpop.f32.mrf.mxu0
        %v962 = vadd.f32 0.0, %v961
        %v963 = vpop.f32.mrf.mxu0
        %v964 = vpop.f32.mrf.mxu0
        %v965 = vpop.f32.mrf.mxu0
        %966 = vdwg.mxu0
        %v967 = vsel %vm626, -inf, %v962
        %v968 = vsel %vm573, %v967, -inf
        %969 = vmax.xlane.f32.xlu0 %v968
        %v970 = vpop.xlane.xlu0 %969
        %v971 = vsub.f32 %v967, %v970
        %v972 = vmul.f32 %v971, 1.442695
        %v973 = vpow.pop %v972
        %v974 = vsel %vm573, %v973, 0.0
        %975 = vadd.xlane.f32.xlu0 %v974
        %v976 = vpop.xlane.xlu0 %975
        %v977 = vrcp.pop %v976
        %v978 = vmul.f32 %v973, %v977
        %s979 = scalar_lea.vmem %s475, 24 [#allocation11]
        %980 = vst.msk [vmem:[%s979] sm:$0xff] %vm573, %v978
        %v981 = vpack.c.bf16 %v978, %v978
        %982 = vrot.lane.b32.xlu0 %v569, 40
        %v983 = vpop.permute.xlu0 %982
        %v985 = vsel %vm573, %v981, 0
        %v988 = vsel %vm646, %v983, 0
        %990 = vmatprep.subr.bf16.mxu0 0
        %991 = vmatpush1.bf16.msra.mxu0 0
        %992 = vmatprep.subr.bf16.mxu0 0
        %993 = vmatpush1.bf16.msra.mxu0 0
        %994 = vmatprep.subr.bf16.mxu0 0
        %995 = vmatpush1.bf16.msra.mxu0 0
        %996 = vmatprep.subr.bf16.mxu0 0
        %997 = vmatpush1.bf16.msra.mxu0 0
        %998 = vmatprep.subr.bf16.mxu0 0
        %999 = vmatpush1.bf16.msra.mxu0 0
        %1000 = vmatprep.subr.bf16.mxu0 0
        %1001 = vmatpush1.bf16.msra.mxu0 0
        %1002 = vmatprep.subr.bf16.mxu0 0
        %1003 = vmatpush1.bf16.msra.mxu0 0
        %1004 = vmatprep.subr.bf16.mxu0 0
        %1005 = vmatpush1.bf16.msra.mxu0 %v988
        %1006 = vmatprep.subr.bf16.mxu0 0
        %1007 = vmatpush2.bf16.msra.mxu0 0
        %1008 = vmatprep.subr.bf16.mxu0 0
        %1009 = vmatpush2.bf16.msra.mxu0 0
        %1010 = vmatprep.subr.bf16.mxu0 0
        %1011 = vmatpush2.bf16.msra.mxu0 0
        %1012 = vmatprep.subr.bf16.mxu0 0
        %1013 = vmatpush2.bf16.msra.mxu0 0
        %1014 = vmatprep.subr.bf16.mxu0 0
        %1015 = vmatpush2.bf16.msra.mxu0 0
        %1016 = vmatprep.subr.bf16.mxu0 0
        %1017 = vmatpush2.bf16.msra.mxu0 0
        %1018 = vmatprep.subr.bf16.mxu0 0
        %1019 = vmatpush2.bf16.msra.mxu0 0
        %1020 = vmatprep.subr.bf16.mxu0 0
        %1021 = vmatpush2.bf16.msra.mxu0 0
        %1022 = vmatprep.mubr.bf16.mxu0 0
        %1023 = vmatmul.mubr.bf16.gmra.mxu0 %v985
        %v1024 = vpop.f32.mrf.mxu0
        %v1025 = vadd.f32 0.0, %v1024
        %v1026 = vpop.f32.mrf.mxu0
        %v1027 = vpop.f32.mrf.mxu0
        %v1028 = vpop.f32.mrf.mxu0
        %1029 = vdwg.mxu0
        %1031 = vrot.lane.b32.xlu0 %v799, 8
        %v1032 = vpop.permute.xlu0 %1031
        %1035 = vrot.lane.b32.xlu0 %v912, 16
        %v1036 = vpop.permute.xlu0 %1035
        %1039 = vrot.lane.b32.xlu0 %v1025, 24
        %v1040 = vpop.permute.xlu0 %1039
        %v1042 = vsel %vm573, %v685, %v1032
        %vm1043 = vcmask 130048
        %v1044 = vsel %vm1043, %v1042, %v1036
        %vm1045 = vcmask 195584
        %v1046 = vsel %vm1045, %v1044, %v1040
        %v1047 = vpack.c.bf16 %v1046, %v1046
        %v1048 = vld [vmem:[%s5] sm:$0xf]
        %v1049 = vld [vmem:[%s5 + $0x4] sm:$0xf]
        %v1050 = vld [vmem:[%s5 + $0x8] sm:$0xf]
        %v1051 = vld [vmem:[%s5 + $0xc] sm:$0xf]
        %v1053 = vlaneseq
        %v1054 = vshrl.u32 %v1053, 7
        %v1055 = vsub.s32 0, %v1054
        %v1056 = vrot.slane %v489, %v1055
        %v1062 = vunpack.c.l.b16 %v1048
        %v1063 = vunpack.c.l.b16 %v1049
        %v1064 = vunpack.c.l.b16 %v1050
        %v1065 = vunpack.c.l.b16 %v1051
        %v1066 = vpack.c.b16 %v1063, %v1062
        %v1067 = vpack.c.b16 %v1065, %v1064
        %v1071 = vsel %vm523, %v1047, 0
        %1073 = vmatprep.subr.bf16.mxu0 0
        %1074 = vmatpush1.bf16.msra.mxu0 0
        %1075 = vmatprep.subr.bf16.mxu0 0
        %1076 = vmatpush1.bf16.msra.mxu0 0
        %1077 = vmatprep.subr.bf16.mxu0 0
        %1078 = vmatpush1.bf16.msra.mxu0 0
        %1079 = vmatprep.subr.bf16.mxu0 0
        %1080 = vmatpush1.bf16.msra.mxu0 0
        %1081 = vmatprep.subr.bf16.mxu0 0
        %1082 = vmatpush1.bf16.msra.mxu0 0
        %1083 = vmatprep.subr.bf16.mxu0 0
        %1084 = vmatpush1.bf16.msra.mxu0 0
        %1085 = vmatprep.subr.bf16.mxu0 0
        %1086 = vmatpush1.bf16.msra.mxu0 %v1067
        %1087 = vmatprep.subr.bf16.mxu0 0
        %1088 = vmatpush1.bf16.msra.mxu0 %v1066
        %1089 = vmatprep.subr.bf16.mxu0 0
        %1090 = vmatpush2.bf16.msra.mxu0 0
        %1091 = vmatprep.subr.bf16.mxu0 0
        %1092 = vmatpush2.bf16.msra.mxu0 0
        %1093 = vmatprep.subr.bf16.mxu0 0
        %1094 = vmatpush2.bf16.msra.mxu0 0
        %1095 = vmatprep.subr.bf16.mxu0 0
        %1096 = vmatpush2.bf16.msra.mxu0 0
        %1097 = vmatprep.subr.bf16.mxu0 0
        %1098 = vmatpush2.bf16.msra.mxu0 0
        %1099 = vmatprep.subr.bf16.mxu0 0
        %1100 = vmatpush2.bf16.msra.mxu0 0
        %1101 = vmatprep.subr.bf16.mxu0 0
        %1102 = vmatpush2.bf16.msra.mxu0 0
        %1103 = vmatprep.subr.bf16.mxu0 0
        %1104 = vmatpush2.bf16.msra.mxu0 0
        %1105 = vmatprep.mubr.bf16.mxu0 0
        %1106 = vmatmul.mubr.bf16.gmra.mxu0 %v1071
        %v1107 = vpop.f32.mrf.mxu0
        %v1108 = vadd.f32 %v1056, %v1107
        %v1109 = vpop.f32.mrf.mxu0
        %v1110 = vpop.f32.mrf.mxu0
        %v1111 = vpop.f32.mrf.mxu0
        %1112 = vdwg.mxu0
        %v1113 = vadd.f32 %v1108, %v485
        %v1114 = vsel %vm523, %v1113, 0.0
        %1115 = vadd.xlane.f32.xlu0 %v1114
        %v1116 = vpop.xlane.xlu0 %1115
        %v1117 = vrcp.pop 32.0
        %v1118 = vmul.f32 %v1116, %v1117
        %v1119 = vsub.f32 %v1113, %v1118
        %v1120 = vmul.f32 %v1119, %v1119
        %v1121 = vsel %vm523, %v1120, 0.0
        %1122 = vadd.xlane.f32.xlu0 %v1121
        %v1123 = vpop.xlane.xlu0 %1122
        %v1124 = vmul.f32 %v1123, %v1117
        %v1125 = vadd.f32 %v1124, 1e-05
        %v1126 = vrsqrt.pop %v1125
        %v1127 = vmul.f32 %v1119, %v1126
        %v1129 = vlaneseq
        %v1130 = vshrl.u32 %v1129, 7
        %v1131 = vsub.s32 0, %v1130
        %v1132 = vrot.slane %v491, %v1131
        %v1134 = vmul.f32 %v1127, %v1132
        %v1136 = vlaneseq
        %v1137 = vshrl.u32 %v1136, 7
        %v1138 = vsub.s32 0, %v1137
        %v1139 = vrot.slane %v493, %v1138
        %v1141 = vadd.f32 %v1134, %v1139
        %1143 = vset.pattern.permute.xlu0 0
        %1144 = vperm.xlu0 %1143, %v487
        %v1145 = vpop.permute.xlu0 %1144
        %v1147 = vmul.f32 %v1141, %v1145
        %v1148 = vpack.c.bf16 %v1147, %v1147
        %v1149 = vld [vmem:[%s6] sm:$0xf]
        %v1150 = vld [vmem:[%s6 + $0x4] sm:$0xf]
        %v1151 = vld [vmem:[%s6 + $0x8] sm:$0xf]
        %v1152 = vld [vmem:[%s6 + $0xc] sm:$0xf]
        %v1153 = vld [vmem:[#allocation7] sm:$0x1]
        %v1155 = vlaneseq
        %v1156 = vshrl.u32 %v1155, 7
        %v1157 = vsub.s32 0, %v1156
        %v1158 = vrot.slane %v1153, %v1157
        %v1164 = vunpack.c.l.b16 %v1149
        %v1165 = vunpack.c.l.b16 %v1150
        %v1166 = vunpack.c.l.b16 %v1151
        %v1167 = vunpack.c.l.b16 %v1152
        %v1168 = vpack.c.b16 %v1165, %v1164
        %v1169 = vpack.c.b16 %v1167, %v1166
        %v1173 = vsel %vm523, %v1148, 0
        %1175 = vmatprep.subr.bf16.mxu0 0
        %1176 = vmatpush1.bf16.msra.mxu0 0
        %1177 = vmatprep.subr.bf16.mxu0 0
        %1178 = vmatpush1.bf16.msra.mxu0 0
        %1179 = vmatprep.subr.bf16.mxu0 0
        %1180 = vmatpush1.bf16.msra.mxu0 0
        %1181 = vmatprep.subr.bf16.mxu0 0
        %1182 = vmatpush1.bf16.msra.mxu0 0
        %1183 = vmatprep.subr.bf16.mxu0 0
        %1184 = vmatpush1.bf16.msra.mxu0 0
        %1185 = vmatprep.subr.bf16.mxu0 0
        %1186 = vmatpush1.bf16.msra.mxu0 0
        %1187 = vmatprep.subr.bf16.mxu0 0
        %1188 = vmatpush1.bf16.msra.mxu0 %v1169
        %1189 = vmatprep.subr.bf16.mxu0 0
        %1190 = vmatpush1.bf16.msra.mxu0 %v1168
        %1191 = vmatprep.subr.bf16.mxu0 0
        %1192 = vmatpush2.bf16.msra.mxu0 0
        %1193 = vmatprep.subr.bf16.mxu0 0
        %1194 = vmatpush2.bf16.msra.mxu0 0
        %1195 = vmatprep.subr.bf16.mxu0 0
        %1196 = vmatpush2.bf16.msra.mxu0 0
        %1197 = vmatprep.subr.bf16.mxu0 0
        %1198 = vmatpush2.bf16.msra.mxu0 0
        %1199 = vmatprep.subr.bf16.mxu0 0
        %1200 = vmatpush2.bf16.msra.mxu0 0
        %1201 = vmatprep.subr.bf16.mxu0 0
        %1202 = vmatpush2.bf16.msra.mxu0 0
        %1203 = vmatprep.subr.bf16.mxu0 0
        %1204 = vmatpush2.bf16.msra.mxu0 0
        %1205 = vmatprep.subr.bf16.mxu0 0
        %1206 = vmatpush2.bf16.msra.mxu0 0
        %1207 = vmatprep.mubr.bf16.mxu0 0
        %1208 = vmatmul.mubr.bf16.gmra.mxu0 %v1173
        %v1209 = vpop.f32.mrf.mxu0
        %v1210 = vadd.f32 %v1158, %v1209
        %v1211 = vpop.f32.mrf.mxu0
        %v1212 = vpop.f32.mrf.mxu0
        %v1213 = vpop.f32.mrf.mxu0
        %1214 = vdwg.mxu0
        %v1215 = vmax.f32 %v1210, 0.0
        %v1216 = vpack.c.bf16 %v1215, %v1215
        %v1217 = vld [vmem:[%s8] sm:$0xf]
        %v1218 = vld [vmem:[%s8 + $0x4] sm:$0xf]
        %v1219 = vld [vmem:[%s8 + $0x8] sm:$0xf]
        %v1220 = vld [vmem:[%s8 + $0xc] sm:$0xf]
        %v1221 = vld [vmem:[%s8 + $0x10] sm:$0xf]
        %v1222 = vld [vmem:[%s8 + $0x14] sm:$0xf]
        %v1223 = vld [vmem:[%s8 + $0x18] sm:$0xf]
        %v1224 = vld [vmem:[%s8 + $0x1c] sm:$0xf]
        %v1226 = vlaneseq
        %v1227 = vshrl.u32 %v1226, 7
        %v1228 = vsub.s32 0, %v1227
        %v1229 = vrot.slane %v495, %v1228
        %v1239 = vunpack.c.l.b16 %v1217
        %v1240 = vunpack.c.l.b16 %v1218
        %v1241 = vunpack.c.l.b16 %v1219
        %v1242 = vunpack.c.l.b16 %v1220
        %v1243 = vunpack.c.l.b16 %v1221
        %v1244 = vunpack.c.l.b16 %v1222
        %v1245 = vunpack.c.l.b16 %v1223
        %v1246 = vunpack.c.l.b16 %v1224
        %v1247 = vpack.c.b16 %v1240, %v1239
        %v1248 = vpack.c.b16 %v1242, %v1241
        %v1249 = vpack.c.b16 %v1244, %v1243
        %v1250 = vpack.c.b16 %v1246, %v1245
        %vm1255 = vcmask 523264
        %v1257 = vsel %vm1255, %v1216, 0
        %1259 = vmatprep.subr.bf16.mxu0 0
        %1260 = vmatpush1.bf16.msra.mxu0 0
        %1261 = vmatprep.subr.bf16.mxu0 0
        %1262 = vmatpush1.bf16.msra.mxu0 0
        %1263 = vmatprep.subr.bf16.mxu0 0
        %1264 = vmatpush1.bf16.msra.mxu0 0
        %1265 = vmatprep.subr.bf16.mxu0 0
        %1266 = vmatpush1.bf16.msra.mxu0 0
        %1267 = vmatprep.subr.bf16.mxu0 0
        %1268 = vmatpush1.bf16.msra.mxu0 %v1250
        %1269 = vmatprep.subr.bf16.mxu0 0
        %1270 = vmatpush1.bf16.msra.mxu0 %v1249
        %1271 = vmatprep.subr.bf16.mxu0 0
        %1272 = vmatpush1.bf16.msra.mxu0 %v1248
        %1273 = vmatprep.subr.bf16.mxu0 0
        %1274 = vmatpush1.bf16.msra.mxu0 %v1247
        %1275 = vmatprep.subr.bf16.mxu0 0
        %1276 = vmatpush2.bf16.msra.mxu0 0
        %1277 = vmatprep.subr.bf16.mxu0 0
        %1278 = vmatpush2.bf16.msra.mxu0 0
        %1279 = vmatprep.subr.bf16.mxu0 0
        %1280 = vmatpush2.bf16.msra.mxu0 0
        %1281 = vmatprep.subr.bf16.mxu0 0
        %1282 = vmatpush2.bf16.msra.mxu0 0
        %1283 = vmatprep.subr.bf16.mxu0 0
        %1284 = vmatpush2.bf16.msra.mxu0 0
        %1285 = vmatprep.subr.bf16.mxu0 0
        %1286 = vmatpush2.bf16.msra.mxu0 0
        %1287 = vmatprep.subr.bf16.mxu0 0
        %1288 = vmatpush2.bf16.msra.mxu0 0
        %1289 = vmatprep.subr.bf16.mxu0 0
        %1290 = vmatpush2.bf16.msra.mxu0 0
        %1291 = vmatprep.mubr.bf16.mxu0 0
        %1292 = vmatmul.mubr.bf16.gmra.mxu0 %v1257
        %v1293 = vpop.f32.mrf.mxu0
        %v1294 = vadd.f32 %v1229, %v1293
        %v1295 = vpop.f32.mrf.mxu0
        %v1296 = vpop.f32.mrf.mxu0
        %v1297 = vpop.f32.mrf.mxu0
        %1298 = vdwg.mxu0
        %v1299 = vadd.f32 %v1294, %v1147
        %v1300 = vsel %vm523, %v1299, 0.0
        %1301 = vadd.xlane.f32.xlu0 %v1300
        %v1302 = vpop.xlane.xlu0 %1301
        %v1303 = vmul.f32 %v1302, %v1117
        %v1304 = vsub.f32 %v1299, %v1303
        %v1305 = vmul.f32 %v1304, %v1304
        %v1306 = vsel %vm523, %v1305, 0.0
        %1307 = vadd.xlane.f32.xlu0 %v1306
        %v1308 = vpop.xlane.xlu0 %1307
        %v1309 = vmul.f32 %v1308, %v1117
        %v1310 = vadd.f32 %v1309, 1e-05
        %v1311 = vrsqrt.pop %v1310
        %v1312 = vmul.f32 %v1304, %v1311
        %v1314 = vlaneseq
        %v1315 = vshrl.u32 %v1314, 7
        %v1316 = vsub.s32 0, %v1315
        %v1317 = vrot.slane %v497, %v1316
        %v1319 = vmul.f32 %v1312, %v1317
        %v1321 = vlaneseq
        %v1322 = vshrl.u32 %v1321, 7
        %v1323 = vsub.s32 0, %v1322
        %v1324 = vrot.slane %v499, %v1323
        %v1326 = vadd.f32 %v1319, %v1324
        %v1327 = vmul.f32 %v1326, %v1145
        %1328 = vst.msk [vmem:[%s468] sm:$0xff] %vm523, %v1327
        %s1329 = sand.u32 %s267, 1
        %s1330 = scalar_lea.sflag [#allocation4], %s1329
        %s1331 = sand.u32 %s267, 1
        %s1332 = smul.addr %s1331, 8
        %s1333 = scalar_lea.vmem [#allocation10], %s1332
        %s1334 = sand.u32 %s293, 1
        %s1335 = scalar_lea.sflag [#allocation12], %s1334
        %s1336 = sand.u32 %s293, 1
        %s1337 = smul.addr %s1336, 32
        %s1338 = scalar_lea.vmem [#allocation11], %s1337
        // Predicated region
        $region77: #{tpu_custom_call.1} parent=59 // pred_check
          %p1339 = pneg %p277
        $region78: #{tpu_custom_call.1} parent=59 // pred_check_branch
          %1341 = sbr.rel (%p1339) target = $region80
        $region79: #{tpu_custom_call.1} parent=59 // pred_region
          %s1343 = ssub.s32 128, 128
          %1344 = vsyncadd %s1330, %s1343
          %s1345 = smul.addr %s34, 128
          %s1346 = scalar_lea.hbm %s10, %s1345
          %s1348 = sshll.u32 %s1333, 4
          %s1349 = int_to_ptr.vmem [resolvable:$true] %s1348
          %1351 = dma.vmem_to_hbm [thread:$0]  %s1349, 128, %s1346, %s1330
        $region80: #{tpu_custom_call.1} parent=59 // pred_fallthru
          _
        // Predicated region
        $region81: #{tpu_custom_call.1} parent=59 // pred_check
          %p1352 = pneg %p303
        $region82: #{tpu_custom_call.1} parent=59 // pred_check_branch
          %1354 = sbr.rel (%p1352) target = $region84
        $region83: #{tpu_custom_call.1} parent=59 // pred_region
          %s1356 = ssub.s32 512, 512
          %1357 = vsyncadd %s1335, %s1356
          %s1358 = smul.addr %s34, 128
          %s1359 = scalar_lea.hbm %s11, %s1358
          %s1360 = sshll.u32 %s1338, 4
          %s1361 = int_to_ptr.vmem [resolvable:$true] %s1360
          %1366 = dma.vmem_to_hbm [thread:$0]  %s1361, 512, %s1359, %s1335, 128, 256, 8
        $region84: #{tpu_custom_call.1} parent=59 // pred_fallthru
          _
      $region60: #{tpu_custom_call.1} parent=5 // pred_fallthru
        _
      %p1367 = scmp.le.s32.totalorder 2, %s29
      // Predicated region
      $region85: #{tpu_custom_call.1} parent=5 // pred_check
        %p1368 = pneg %p1367
      $region86: #{tpu_custom_call.1} parent=5 // pred_check_branch
        %1370 = sbr.rel (%p1368) target = $region88
      $region87: #{tpu_custom_call.1} parent=5 // pred_region
        %s1371 = ssub.s32 %s29, 2
        // Predicated region
        $region89: #{tpu_custom_call.1} parent=87 // pred_check
          %p1372 = pneg %p283
        $region90: #{tpu_custom_call.1} parent=87 // pred_check_branch
          %1374 = sbr.rel (%p1372) target = $region92
        $region91: #{tpu_custom_call.1} parent=87 // pred_region
          %s1375 = sand.u32 %s268, 1
          %s1376 = scalar_lea.sflag [#allocation4], %s1375
          %s1377 = sand.u32 %s268, 1
          %s1378 = smul.addr %s1377, 8
          %s1379 = scalar_lea.vmem [#allocation10], %s1378
          %1380 = dma.done %s1376, 128
        $region92: #{tpu_custom_call.1} parent=87 // pred_fallthru
          _
        // Predicated region
        $region93: #{tpu_custom_call.1} parent=87 // pred_check
          %p1381 = pneg %p309
        $region94: #{tpu_custom_call.1} parent=87 // pred_check_branch
          %1383 = sbr.rel (%p1381) target = $region96
        $region95: #{tpu_custom_call.1} parent=87 // pred_region
          %s1384 = sand.u32 %s294, 1
          %s1385 = scalar_lea.sflag [#allocation12], %s1384
          %s1386 = sand.u32 %s294, 1
          %s1387 = smul.addr %s1386, 32
          %s1388 = scalar_lea.vmem [#allocation11], %s1387
          %1389 = dma.done %s1385, 512
        $region96: #{tpu_custom_call.1} parent=87 // pred_fallthru
          _
      $region88: #{tpu_custom_call.1} parent=5 // pred_fallthru
        _
    $region6: #{tpu_custom_call.1} parent=1 // loop_footer
      %s33 = sadd.s32 1, %s29
    $region7: #{tpu_custom_call.1} parent=1 // loop_footer_branch
      %28 = sbr.rel target = $region3
    $region8: #{tpu_custom_call.1} parent=1 // loop_exit
      _
    %1390 = vsyncpa [#allocation3], 1
    %s1391 = scalar_lea.sflag [#allocation3], 1
    %1392 = vsyncpa %s1391, 1
    %1393 = vsyncpa [#allocation6], 1
    %1394 = vsyncpa [#allocation9], 1
    %1395 = vsyncpa [#allocation4], 1
    %s1396 = scalar_lea.sflag [#allocation4], 1
    %1397 = vsyncpa %s1396, 1
    %1398 = vsyncpa [#allocation12], 1
    %s1399 = scalar_lea.sflag [#allocation12], 1
    %1400 = vsyncpa %s1399, 1

</llo_original>
